<compile_context>
chip_gen: v5e
topology: v5e:2x2
jax: 0.10.0
libtpu: 0.0.40
codegen_flags: <defaults>
</compile_context>

<pallas_src>
import functools

import jax
import jax.numpy as jnp
from jax.experimental import pallas as pl
from jax.experimental.pallas import tpu as pltpu

LANE = 128
SUBLANE = 8


def _round_up(n, m):
    return ((n + m - 1) // m) * m


def _pad2(a, rows, cols):
    return jnp.pad(a, ((0, rows - a.shape[0]), (0, cols - a.shape[1])))


# ----------------------------- Pallas kernel ---------------------------------
def _cvae_kernel(
    x_ref,                      # [BT, Dp]      f32 (padded flattened image)
    y_ref,                      # [BT, Cp]      f32 (padded one-hot)
    eps_ref,                    # [1, LP]       f32 (eps in cols [0:L], zeros after)
    w1x_ref, w1y_ref, b1_ref,   # [Dp,Hp] bf16, [Cp,Hp] bf16, [1,Hp] f32
    wml_ref, bml_ref,           # [Hp,2*LP] bf16 (fused mu|logvar), [1,2*LP] f32
    w3z_ref, w3y_ref, b3_ref,   # [LP,Hp] bf16, [Cp,Hp] bf16, [1,Hp] f32
    w4_ref, b4_ref,             # [Hp,Dp] bf16, [1,Dp] f32
    recon_ref,                  # [BT, Dp]      f32 output (lane-dense)
    mulv_ref,                   # [BT, 2*LP]    f32 output (lane-dense mu|logvar slab)
):
    cdt = jnp.bfloat16
    x = x_ref[...].astype(cdt)
    y = y_ref[...].astype(cdt)

    # ---- encode: h1 = relu(x @ W1x + y @ W1y + b1)  (== Linear(cat(x, y))) ----
    h1 = (jnp.dot(x, w1x_ref[...], preferred_element_type=jnp.float32)
          + jnp.dot(y, w1y_ref[...], preferred_element_type=jnp.float32)
          + b1_ref[...])
    h1 = jnp.maximum(h1, 0.0)

    # ---- fused mu / logvar projection: one MXU push, one lane-dense store ----
    mulv = (jnp.dot(h1.astype(cdt), wml_ref[...],
                    preferred_element_type=jnp.float32) + bml_ref[...])
    mulv_ref[...] = mulv

    # ---- reparameterise: z = mu + eps * exp(0.5 * logvar)  (128-aligned splits) ----
    LP = eps_ref.shape[1]
    mu = mulv[:, :LP]
    logvar = mulv[:, LP:]
    std = jnp.exp(0.5 * logvar)
    z = mu + eps_ref[...] * std            # eps broadcasts over batch (as in torch code)

    # ---- decode: Linear(cat(z, y)) = z @ W3z + y @ W3y + b3 ----
    h3 = (jnp.dot(z.astype(cdt), w3z_ref[...], preferred_element_type=jnp.float32)
          + jnp.dot(y, w3y_ref[...], preferred_element_type=jnp.float32)
          + b3_ref[...])
    h3 = jnp.maximum(h3, 0.0)

    logits = (jnp.dot(h3.astype(cdt), w4_ref[...],
                      preferred_element_type=jnp.float32) + b4_ref[...])
    recon_ref[...] = jax.nn.sigmoid(logits)


# ------------------------------- wrapper --------------------------------------
@functools.partial(jax.jit, static_argnames=("input_size", "latent_size", "n_classes"))
def conditional_vae_forward(x, y, eps, params, *, input_size, latent_size, n_classes):
    """Replicates ConditionalVAE.forward(x, y) -> (recon, mu, logvar)."""
    B = x.shape[0]
    D, C, L = input_size, n_classes, latent_size
    H = params["w1"].shape[1]                      # hidden = 400

    # Hardware-aligned padded sizes (zero padding keeps the math exact).
    Dp = _round_up(D, LANE)
    Cp = _round_up(C, LANE)
    Hp = _round_up(H, LANE)                        # 400 -> 512
    LP = LANE                                      # padded latent slab width
    Bp = _round_up(B, SUBLANE)
    BT = min(Bp, 256)                              # batch tile (multiple of 8)
    Bp = _round_up(Bp, BT)

    wdt = jnp.bfloat16                             # weights only; elementwise stays f32

    # ---- activations (f32, padded; cast to bf16 inside the kernel) ----
    x_flat = x.reshape(B, D)
    x_p = _pad2(x_flat, Bp, Dp).astype(jnp.float32)
    y_p = _pad2(y, Bp, Cp).astype(jnp.float32)
    eps_p = jnp.zeros((1, LP), jnp.float32).at[0, :L].set(eps.astype(jnp.float32))

    # ---- split W1 into x-part / y-part (kills the wrapper concat), pad, cast ----
    w1 = params["w1"]
    w1x = _pad2(w1[:D, :], Dp, Hp).astype(wdt)
    w1y = _pad2(w1[D:, :], Cp, Hp).astype(wdt)
    b1 = _pad2(params["b1"].reshape(1, H), 1, Hp)

    # ---- fuse mu/logvar weights: cols [0:L] = W21, cols [LP:LP+L] = W22 ----
    w_mulv = jnp.zeros((Hp, 2 * LP), jnp.float32)
    w_mulv = w_mulv.at[:H, :L].set(params["w21"])
    w_mulv = w_mulv.at[:H, LP:LP + L].set(params["w22"])
    w_mulv = w_mulv.astype(wdt)
    b_mulv = jnp.zeros((1, 2 * LP), jnp.float32)
    b_mulv = b_mulv.at[0, :L].set(params["b21"])
    b_mulv = b_mulv.at[0, LP:LP + L].set(params["b22"])

    # ---- split W3 into z-part / y-part, pad, cast ----
    w3 = params["w3"]
    w3z = _pad2(w3[:L, :], LP, Hp).astype(wdt)
    w3y = _pad2(w3[L:, :], Cp, Hp).astype(wdt)
    b3 = _pad2(params["b3"].reshape(1, H), 1, Hp)

    w4 = _pad2(params["w4"], Hp, Dp).astype(wdt)
    b4 = _pad2(params["b4"].reshape(1, D), 1, Dp)

    # ---- grid over batch tiles; weights are block-index-invariant (VMEM resident) ----
    grid = (Bp // BT,)

    def act_spec(cols):
        return pl.BlockSpec((BT, cols), lambda i: (i, 0))

    def w_spec(r, c):
        return pl.BlockSpec((r, c), lambda i: (0, 0))

    in_specs = [
        act_spec(Dp),                 # x
        act_spec(Cp),                 # y
        w_spec(1, LP),                # eps
        w_spec(Dp, Hp), w_spec(Cp, Hp), w_spec(1, Hp),      # w1x, w1y, b1
        w_spec(Hp, 2 * LP), w_spec(1, 2 * LP),              # fused w_mulv, b_mulv
        w_spec(LP, Hp), w_spec(Cp, Hp), w_spec(1, Hp),      # w3z, w3y, b3
        w_spec(Hp, Dp), w_spec(1, Dp),                      # w4, b4
    ]
    out_specs = (
        pl.BlockSpec((BT, Dp), lambda i: (i, 0)),           # recon (lane-dense)
        pl.BlockSpec((BT, 2 * LP), lambda i: (i, 0)),       # mu|logvar slab (lane-dense)
    )
    out_shapes = (
        jax.ShapeDtypeStruct((Bp, Dp), jnp.float32),
        jax.ShapeDtypeStruct((Bp, 2 * LP), jnp.float32),
    )

    recon_p, mulv = pl.pallas_call(
        _cvae_kernel,
        out_shape=out_shapes,
        grid=grid,
        in_specs=in_specs,
        out_specs=out_specs,
        compiler_params=pltpu.CompilerParams(
            dimension_semantics=("parallel",),   # lets v7x shard batch tiles over 2 TCs
        ),
    )(x_p, y_p, eps_p, w1x, w1y, b1, w_mulv, b_mulv, w3z, w3y, b3, w4, b4)

    # Un-pad / split (wrapper-side layout plumbing, no extra kernel work).
    recon = recon_p[:B, :D]
    mu = mulv[:B, :L]
    logvar = mulv[:B, LP:LP + L]
    return recon, mu, logvar


# --------------------------- parameter initialisation --------------------------
def init_params(key, input_size, latent_size, n_classes, hidden=400):
    """Init mimicking nn.Linear defaults; weights stored [in, out] so kernel does x @ W."""
    def linear(k, fan_in, fan_out):
        kw, kb = jax.random.split(k)
        bound = 1.0 / jnp.sqrt(fan_in)
        w = jax.random.uniform(kw, (fan_in, fan_out), jnp.float32, -bound, bound)
        b = jax.random.uniform(kb, (fan_out,), jnp.float32, -bound, bound)
        return w, b

    k1, k21, k22, k3, k4 = jax.random.split(key, 5)
    w1, b1 = linear(k1, input_size + n_classes, hidden)
    w21, b21 = linear(k21, hidden, latent_size)
    w22, b22 = linear(k22, hidden, latent_size)
    w3, b3 = linear(k3, latent_size + n_classes, hidden)
    w4, b4 = linear(k4, hidden, input_size)
    return dict(w1=w1, b1=b1, w21=w21, b21=b21, w22=w22, b22=b22,
                w3=w3, b3=b3, w4=w4, b4=b4)


# -------------------------------- reference ------------------------------------
def reference_forward(x, y, eps, params, input_size, latent_size):
    x_flat = x.reshape(-1, input_size)
    xy = jnp.concatenate([x_flat, y], axis=1)
    h1 = jax.nn.relu(xy @ params["w1"] + params["b1"])
    mu = h1 @ params["w21"] + params["b21"]
    logvar = h1 @ params["w22"] + params["b22"]
    z = mu + eps[None, :] * jnp.exp(0.5 * logvar)
    zy = jnp.concatenate([z, y], axis=1)
    h3 = jax.nn.relu(zy @ params["w3"] + params["b3"])
    recon = jax.nn.sigmoid(h3 @ params["w4"] + params["b4"])
    return recon, mu, logvar


# ---------------------------------- main ---------------------------------------
if __name__ == "__main__":
    INPUT_SIZE = 64      # e.g. 1x8x8 images
    LATENT_SIZE = 16
    N_CLASSES = 10
    BATCH = 4

    key = jax.random.PRNGKey(0)
    kx, ky, keps, kparams = jax.random.split(key, 4)

    x = jax.random.uniform(kx, (BATCH, 1, 8, 8), jnp.float32)        # NCHW image
    labels = jax.random.randint(ky, (BATCH,), 0, N_CLASSES)
    y = jax.nn.one_hot(labels, N_CLASSES, dtype=jnp.float32)         # conditioning
    eps = jax.random.normal(keps, (LATENT_SIZE,), jnp.float32)       # torch.randn(latent_size)

    params = init_params(kparams, INPUT_SIZE, LATENT_SIZE, N_CLASSES)

    recon, mu, logvar = conditional_vae_forward(
        x, y, eps, params,
        input_size=INPUT_SIZE, latent_size=LATENT_SIZE, n_classes=N_CLASSES)
    jax.block_until_ready((recon, mu, logvar))

    # correctness check vs pure-f32 JAX reference (bf16 matmul weights -> loose atol)
    r_ref, mu_ref, lv_ref = reference_forward(x, y, eps, params, INPUT_SIZE, LATENT_SIZE)
    assert recon.shape == (BATCH, INPUT_SIZE)
    assert mu.shape == (BATCH, LATENT_SIZE) and logvar.shape == (BATCH, LATENT_SIZE)
    assert jnp.allclose(recon, r_ref, atol=2e-2)
    assert jnp.allclose(mu, mu_ref, atol=2e-2)
    assert jnp.allclose(logvar, lv_ref, atol=2e-2)

    print("KERNEL_OK")
</pallas_src>

<mosaic_0001>
module attributes {stable_mosaic.version = 11 : i64} {
  func.func @_cvae_kernel(%arg0: i32, %arg1: memref<8x128xf32, #tpu.memory_space<vmem>>, %arg2: memref<8x128xf32, #tpu.memory_space<vmem>>, %arg3: memref<1x128xf32, #tpu.memory_space<vmem>>, %arg4: memref<128x512xbf16, #tpu.memory_space<vmem>>, %arg5: memref<128x512xbf16, #tpu.memory_space<vmem>>, %arg6: memref<1x512xf32, #tpu.memory_space<vmem>>, %arg7: memref<512x256xbf16, #tpu.memory_space<vmem>>, %arg8: memref<1x256xf32, #tpu.memory_space<vmem>>, %arg9: memref<128x512xbf16, #tpu.memory_space<vmem>>, %arg10: memref<128x512xbf16, #tpu.memory_space<vmem>>, %arg11: memref<1x512xf32, #tpu.memory_space<vmem>>, %arg12: memref<512x128xbf16, #tpu.memory_space<vmem>>, %arg13: memref<1x128xf32, #tpu.memory_space<vmem>>, %arg14: memref<8x128xf32, #tpu.memory_space<vmem>>, %arg15: memref<8x256xf32, #tpu.memory_space<vmem>>) attributes {dimension_semantics = [#tpu.dimension_semantics<parallel>], iteration_bounds = array<i64: 1>, scalar_prefetch = 0 : i64, scratch_operands = 0 : i64, tpu.core_type = #tpu.core_type<tc>, window_params = [{transform_indices = @transform_0, window_bounds = array<i64: 8, 128>}, {transform_indices = @transform_1, window_bounds = array<i64: 8, 128>}, {pipeline_mode = #tpu.pipeline_mode<synchronous>, transform_indices = @transform_2, window_bounds = array<i64: 1, 128>}, {pipeline_mode = #tpu.pipeline_mode<synchronous>, transform_indices = @transform_3, window_bounds = array<i64: 128, 512>}, {pipeline_mode = #tpu.pipeline_mode<synchronous>, transform_indices = @transform_4, window_bounds = array<i64: 128, 512>}, {pipeline_mode = #tpu.pipeline_mode<synchronous>, transform_indices = @transform_5, window_bounds = array<i64: 1, 512>}, {pipeline_mode = #tpu.pipeline_mode<synchronous>, transform_indices = @transform_6, window_bounds = array<i64: 512, 256>}, {pipeline_mode = #tpu.pipeline_mode<synchronous>, transform_indices = @transform_7, window_bounds = array<i64: 1, 256>}, {pipeline_mode = #tpu.pipeline_mode<synchronous>, transform_indices = @transform_8, window_bounds = array<i64: 128, 512>}, {pipeline_mode = #tpu.pipeline_mode<synchronous>, transform_indices = @transform_9, window_bounds = array<i64: 128, 512>}, {pipeline_mode = #tpu.pipeline_mode<synchronous>, transform_indices = @transform_10, window_bounds = array<i64: 1, 512>}, {pipeline_mode = #tpu.pipeline_mode<synchronous>, transform_indices = @transform_11, window_bounds = array<i64: 512, 128>}, {pipeline_mode = #tpu.pipeline_mode<synchronous>, transform_indices = @transform_12, window_bounds = array<i64: 1, 128>}, {transform_indices = @transform_13, window_bounds = array<i64: 8, 128>}, {transform_indices = @transform_14, window_bounds = array<i64: 8, 256>}]} {
    %c0 = arith.constant 0 : index
    %c0_0 = arith.constant 0 : index
    %0 = vector.load %arg1[%c0, %c0_0] : memref<8x128xf32, #tpu.memory_space<vmem>>, vector<8x128xf32>
    %1 = arith.truncf %0 : vector<8x128xf32> to vector<8x128xbf16>
    %c0_1 = arith.constant 0 : index
    %c0_2 = arith.constant 0 : index
    %2 = vector.load %arg2[%c0_1, %c0_2] : memref<8x128xf32, #tpu.memory_space<vmem>>, vector<8x128xf32>
    %3 = arith.truncf %2 : vector<8x128xf32> to vector<8x128xbf16>
    %c0_3 = arith.constant 0 : index
    %c0_4 = arith.constant 0 : index
    %4 = vector.load %arg4[%c0_3, %c0_4] : memref<128x512xbf16, #tpu.memory_space<vmem>>, vector<128x512xbf16>
    %cst = arith.constant dense<0.000000e+00> : vector<8x512xf32>
    %5 = tpu.matmul %1, %4, %cst {dimension_numbers = #tpu.dot_dimension_numbers<[1], [0], [0], [1], [0, 0, 1, 1], [], []>} : vector<8x128xbf16>, vector<128x512xbf16>, vector<8x512xf32> -> vector<8x512xf32>
    %c0_5 = arith.constant 0 : index
    %c0_6 = arith.constant 0 : index
    %6 = vector.load %arg5[%c0_5, %c0_6] : memref<128x512xbf16, #tpu.memory_space<vmem>>, vector<128x512xbf16>
    %cst_7 = arith.constant dense<0.000000e+00> : vector<8x512xf32>
    %7 = tpu.matmul %3, %6, %cst_7 {dimension_numbers = #tpu.dot_dimension_numbers<[1], [0], [0], [1], [0, 0, 1, 1], [], []>} : vector<8x128xbf16>, vector<128x512xbf16>, vector<8x512xf32> -> vector<8x512xf32>
    %8 = arith.addf %5, %7 : vector<8x512xf32>
    %c0_8 = arith.constant 0 : index
    %c0_9 = arith.constant 0 : index
    %9 = vector.load %arg6[%c0_8, %c0_9] : memref<1x512xf32, #tpu.memory_space<vmem>>, vector<1x512xf32>
    %10 = vector.broadcast %9 : vector<1x512xf32> to vector<8x512xf32>
    %11 = arith.addf %8, %10 : vector<8x512xf32>
    %cst_10 = arith.constant 0.000000e+00 : f32
    %12 = vector.broadcast %cst_10 : f32 to vector<8x512xf32>
    %13 = arith.maximumf %11, %12 : vector<8x512xf32>
    %14 = arith.truncf %13 : vector<8x512xf32> to vector<8x512xbf16>
    %c0_11 = arith.constant 0 : index
    %c0_12 = arith.constant 0 : index
    %15 = vector.load %arg7[%c0_11, %c0_12] : memref<512x256xbf16, #tpu.memory_space<vmem>>, vector<512x256xbf16>
    %cst_13 = arith.constant dense<0.000000e+00> : vector<8x256xf32>
    %16 = tpu.matmul %14, %15, %cst_13 {dimension_numbers = #tpu.dot_dimension_numbers<[1], [0], [0], [1], [0, 0, 1, 1], [], []>} : vector<8x512xbf16>, vector<512x256xbf16>, vector<8x256xf32> -> vector<8x256xf32>
    %c0_14 = arith.constant 0 : index
    %c0_15 = arith.constant 0 : index
    %17 = vector.load %arg8[%c0_14, %c0_15] : memref<1x256xf32, #tpu.memory_space<vmem>>, vector<1x256xf32>
    %18 = vector.broadcast %17 : vector<1x256xf32> to vector<8x256xf32>
    %19 = arith.addf %16, %18 : vector<8x256xf32>
    %c0_16 = arith.constant 0 : index
    %c0_17 = arith.constant 0 : index
    %20 = vector.load %arg15[%c0_16, %c0_17] : memref<8x256xf32, #tpu.memory_space<vmem>>, vector<8x256xf32>
    tpu.vector_store %arg15[%c0_16, %c0_17], %19 {strides = array<i32>} : memref<8x256xf32, #tpu.memory_space<vmem>>, vector<8x256xf32>,
    %21 = vector.extract_strided_slice %19 {offsets = [0, 0], sizes = [8, 128], strides = [1, 1]} : vector<8x256xf32> to vector<8x128xf32>
    %22 = vector.extract_strided_slice %19 {offsets = [0, 128], sizes = [8, 128], strides = [1, 1]} : vector<8x256xf32> to vector<8x128xf32>
    %cst_18 = arith.constant 5.000000e-01 : f32
    %23 = vector.broadcast %cst_18 : f32 to vector<8x128xf32>
    %24 = arith.mulf %23, %22 : vector<8x128xf32>
    %25 = math.exp %24 : vector<8x128xf32>
    %c0_19 = arith.constant 0 : index
    %c0_20 = arith.constant 0 : index
    %26 = vector.load %arg3[%c0_19, %c0_20] : memref<1x128xf32, #tpu.memory_space<vmem>>, vector<1x128xf32>
    %27 = vector.broadcast %26 : vector<1x128xf32> to vector<8x128xf32>
    %28 = arith.mulf %27, %25 : vector<8x128xf32>
    %29 = arith.addf %21, %28 : vector<8x128xf32>
    %30 = arith.truncf %29 : vector<8x128xf32> to vector<8x128xbf16>
    %c0_21 = arith.constant 0 : index
    %c0_22 = arith.constant 0 : index
    %31 = vector.load %arg9[%c0_21, %c0_22] : memref<128x512xbf16, #tpu.memory_space<vmem>>, vector<128x512xbf16>
    %cst_23 = arith.constant dense<0.000000e+00> : vector<8x512xf32>
    %32 = tpu.matmul %30, %31, %cst_23 {dimension_numbers = #tpu.dot_dimension_numbers<[1], [0], [0], [1], [0, 0, 1, 1], [], []>} : vector<8x128xbf16>, vector<128x512xbf16>, vector<8x512xf32> -> vector<8x512xf32>
    %c0_24 = arith.constant 0 : index
    %c0_25 = arith.constant 0 : index
    %33 = vector.load %arg10[%c0_24, %c0_25] : memref<128x512xbf16, #tpu.memory_space<vmem>>, vector<128x512xbf16>
    %cst_26 = arith.constant dense<0.000000e+00> : vector<8x512xf32>
    %34 = tpu.matmul %3, %33, %cst_26 {dimension_numbers = #tpu.dot_dimension_numbers<[1], [0], [0], [1], [0, 0, 1, 1], [], []>} : vector<8x128xbf16>, vector<128x512xbf16>, vector<8x512xf32> -> vector<8x512xf32>
    %35 = arith.addf %32, %34 : vector<8x512xf32>
    %c0_27 = arith.constant 0 : index
    %c0_28 = arith.constant 0 : index
    %36 = vector.load %arg11[%c0_27, %c0_28] : memref<1x512xf32, #tpu.memory_space<vmem>>, vector<1x512xf32>
    %37 = vector.broadcast %36 : vector<1x512xf32> to vector<8x512xf32>
    %38 = arith.addf %35, %37 : vector<8x512xf32>
    %cst_29 = arith.constant 0.000000e+00 : f32
    %39 = vector.broadcast %cst_29 : f32 to vector<8x512xf32>
    %40 = arith.maximumf %38, %39 : vector<8x512xf32>
    %41 = arith.truncf %40 : vector<8x512xf32> to vector<8x512xbf16>
    %c0_30 = arith.constant 0 : index
    %c0_31 = arith.constant 0 : index
    %42 = vector.load %arg12[%c0_30, %c0_31] : memref<512x128xbf16, #tpu.memory_space<vmem>>, vector<512x128xbf16>
    %cst_32 = arith.constant dense<0.000000e+00> : vector<8x128xf32>
    %43 = tpu.matmul %41, %42, %cst_32 {dimension_numbers = #tpu.dot_dimension_numbers<[1], [0], [0], [1], [0, 0, 1, 1], [], []>} : vector<8x512xbf16>, vector<512x128xbf16>, vector<8x128xf32> -> vector<8x128xf32>
    %c0_33 = arith.constant 0 : index
    %c0_34 = arith.constant 0 : index
    %44 = vector.load %arg13[%c0_33, %c0_34] : memref<1x128xf32, #tpu.memory_space<vmem>>, vector<1x128xf32>
    %45 = vector.broadcast %44 : vector<1x128xf32> to vector<8x128xf32>
    %46 = arith.addf %43, %45 : vector<8x128xf32>
    %47 = arith.negf %46 : vector<8x128xf32>
    %48 = math.exp %47 : vector<8x128xf32>
    %cst_35 = arith.constant 1.000000e+00 : f32
    %49 = vector.broadcast %cst_35 : f32 to vector<8x128xf32>
    %50 = arith.addf %49, %48 : vector<8x128xf32>
    %51 = arith.divf %49, %50 : vector<8x128xf32>
    %c0_36 = arith.constant 0 : index
    %c0_37 = arith.constant 0 : index
    %52 = vector.load %arg14[%c0_36, %c0_37] : memref<8x128xf32, #tpu.memory_space<vmem>>, vector<8x128xf32>
    tpu.vector_store %arg14[%c0_36, %c0_37], %51 {strides = array<i32>} : memref<8x128xf32, #tpu.memory_space<vmem>>, vector<8x128xf32>,
    return
  }
  func.func @transform_0(%arg0: i32) -> (i32, i32) {
    %c0_i32 = arith.constant 0 : i32
    %c0_i32_0 = arith.constant 0 : i32
    return %arg0, %c0_i32 : i32, i32
  }
  func.func @transform_1(%arg0: i32) -> (i32, i32) {
    %c0_i32 = arith.constant 0 : i32
    %c0_i32_0 = arith.constant 0 : i32
    return %arg0, %c0_i32 : i32, i32
  }
  func.func @transform_2(%arg0: i32) -> (i32, i32) {
    %c0_i32 = arith.constant 0 : i32
    %c0_i32_0 = arith.constant 0 : i32
    %c0_i32_1 = arith.constant 0 : i32
    return %c0_i32, %c0_i32_0 : i32, i32
  }
  func.func @transform_3(%arg0: i32) -> (i32, i32) {
    %c0_i32 = arith.constant 0 : i32
    %c0_i32_0 = arith.constant 0 : i32
    %c0_i32_1 = arith.constant 0 : i32
    return %c0_i32, %c0_i32_0 : i32, i32
  }
  func.func @transform_4(%arg0: i32) -> (i32, i32) {
    %c0_i32 = arith.constant 0 : i32
    %c0_i32_0 = arith.constant 0 : i32
    %c0_i32_1 = arith.constant 0 : i32
    return %c0_i32, %c0_i32_0 : i32, i32
  }
  func.func @transform_5(%arg0: i32) -> (i32, i32) {
    %c0_i32 = arith.constant 0 : i32
    %c0_i32_0 = arith.constant 0 : i32
    %c0_i32_1 = arith.constant 0 : i32
    return %c0_i32, %c0_i32_0 : i32, i32
  }
  func.func @transform_6(%arg0: i32) -> (i32, i32) {
    %c0_i32 = arith.constant 0 : i32
    %c0_i32_0 = arith.constant 0 : i32
    %c0_i32_1 = arith.constant 0 : i32
    return %c0_i32, %c0_i32_0 : i32, i32
  }
  func.func @transform_7(%arg0: i32) -> (i32, i32) {
    %c0_i32 = arith.constant 0 : i32
    %c0_i32_0 = arith.constant 0 : i32
    %c0_i32_1 = arith.constant 0 : i32
    return %c0_i32, %c0_i32_0 : i32, i32
  }
  func.func @transform_8(%arg0: i32) -> (i32, i32) {
    %c0_i32 = arith.constant 0 : i32
    %c0_i32_0 = arith.constant 0 : i32
    %c0_i32_1 = arith.constant 0 : i32
    return %c0_i32, %c0_i32_0 : i32, i32
  }
  func.func @transform_9(%arg0: i32) -> (i32, i32) {
    %c0_i32 = arith.constant 0 : i32
    %c0_i32_0 = arith.constant 0 : i32
    %c0_i32_1 = arith.constant 0 : i32
    return %c0_i32, %c0_i32_0 : i32, i32
  }
  func.func @transform_10(%arg0: i32) -> (i32, i32) {
    %c0_i32 = arith.constant 0 : i32
    %c0_i32_0 = arith.constant 0 : i32
    %c0_i32_1 = arith.constant 0 : i32
    return %c0_i32, %c0_i32_0 : i32, i32
  }
  func.func @transform_11(%arg0: i32) -> (i32, i32) {
    %c0_i32 = arith.constant 0 : i32
    %c0_i32_0 = arith.constant 0 : i32
    %c0_i32_1 = arith.constant 0 : i32
    return %c0_i32, %c0_i32_0 : i32, i32
  }
  func.func @transform_12(%arg0: i32) -> (i32, i32) {
    %c0_i32 = arith.constant 0 : i32
    %c0_i32_0 = arith.constant 0 : i32
    %c0_i32_1 = arith.constant 0 : i32
    return %c0_i32, %c0_i32_0 : i32, i32
  }
  func.func @transform_13(%arg0: i32) -> (i32, i32) {
    %c0_i32 = arith.constant 0 : i32
    %c0_i32_0 = arith.constant 0 : i32
    return %arg0, %c0_i32 : i32, i32
  }
  func.func @transform_14(%arg0: i32) -> (i32, i32) {
    %c0_i32 = arith.constant 0 : i32
    %c0_i32_0 = arith.constant 0 : i32
    return %arg0, %c0_i32 : i32, i32
  }
}

</mosaic_0001>

<llo_original>
// kernel: conditional_vae_forward.1
$region0: #{conditional_vae_forward.1}
  #allocation0 [shape = 'u32[]', space=smem, size = 0x4, offset = 0x4, fixed_abs, tag = 'smem constant byte address 0x4 - core index']
  #allocation1 [shape = 'u32[72,128]{1,0:T(1,128)}', space=vmem, size = 0x9000, scoped, tag = 'internal scratch']
  %s0 = inlined_call_operand.vmem [shape: f32[8,128], index: 0, kind: input, shape index: {}]
  %s1 = inlined_call_operand.vmem [shape: f32[8,128], index: 1, kind: input, shape index: {}]
  %s2 = inlined_call_operand.vmem [shape: f32[1,128], index: 2, kind: input, shape index: {}]
  %s3 = inlined_call_operand.vmem [shape: bf16[128,512], index: 3, kind: input, shape index: {}]
  %s4 = inlined_call_operand.vmem [shape: bf16[128,512], index: 4, kind: input, shape index: {}]
  %s5 = inlined_call_operand.vmem [shape: f32[1,512], index: 5, kind: input, shape index: {}]
  %s6 = inlined_call_operand.vmem [shape: bf16[512,256], index: 6, kind: input, shape index: {}]
  %s7 = inlined_call_operand.vmem [shape: f32[1,256], index: 7, kind: input, shape index: {}]
  %s8 = inlined_call_operand.vmem [shape: bf16[128,512], index: 8, kind: input, shape index: {}]
  %s9 = inlined_call_operand.vmem [shape: bf16[128,512], index: 9, kind: input, shape index: {}]
  %s10 = inlined_call_operand.vmem [shape: f32[1,512], index: 10, kind: input, shape index: {}]
  %s11 = inlined_call_operand.vmem [shape: bf16[512,128], index: 11, kind: input, shape index: {}]
  %s12 = inlined_call_operand.vmem [shape: f32[1,128], index: 12, kind: input, shape index: {}]
  %s13 = inlined_call_operand.vmem [shape: f32[8,128], index: 13, kind: output, shape index: {0}]
  %s14 = inlined_call_operand.vmem [shape: f32[8,256], index: 14, kind: output, shape index: {1}]
  %15 = xla_tuple %s13, %s14
  %s16 = sld [smem:[#allocation0]]
  $region70: #{conditional_vae_forward.1} parent=0
    _
  %s18 = ssub.s32 1, %s16
  %s19 = scalar_select 0, %s18, %s16
  // Predicated region
  $region2: #{conditional_vae_forward.1} parent=0 // pred_check
    _
  $region3: #{conditional_vae_forward.1} parent=0 // pred_check_branch
    %21 = sbr.rel (0) target = $region5
  $region4: #{conditional_vae_forward.1} parent=0 // pred_region
    _
  $region5: #{conditional_vae_forward.1} parent=0 // pred_fallthru
    _
  // Predicated region
  $region6: #{conditional_vae_forward.1} parent=0 // pred_check
    _
  $region7: #{conditional_vae_forward.1} parent=0 // pred_check_branch
    %23 = sbr.rel (0) target = $region9
  $region8: #{conditional_vae_forward.1} parent=0 // pred_region
    _
  $region9: #{conditional_vae_forward.1} parent=0 // pred_fallthru
    _
  // Predicated region
  $region10: #{conditional_vae_forward.1} parent=0 // pred_check
    _
  $region11: #{conditional_vae_forward.1} parent=0 // pred_check_branch
    %25 = sbr.rel (0) target = $region13
  $region12: #{conditional_vae_forward.1} parent=0 // pred_region
    _
  $region13: #{conditional_vae_forward.1} parent=0 // pred_fallthru
    _
  // Predicated region
  $region14: #{conditional_vae_forward.1} parent=0 // pred_check
    _
  $region15: #{conditional_vae_forward.1} parent=0 // pred_check_branch
    %27 = sbr.rel (0) target = $region17
  $region16: #{conditional_vae_forward.1} parent=0 // pred_region
    _
  $region17: #{conditional_vae_forward.1} parent=0 // pred_fallthru
    _
  // Predicated region
  $region18: #{conditional_vae_forward.1} parent=0 // pred_check
    _
  $region19: #{conditional_vae_forward.1} parent=0 // pred_check_branch
    %29 = sbr.rel (0) target = $region21
  $region20: #{conditional_vae_forward.1} parent=0 // pred_region
    _
  $region21: #{conditional_vae_forward.1} parent=0 // pred_fallthru
    _
  // Predicated region
  $region22: #{conditional_vae_forward.1} parent=0 // pred_check
    _
  $region23: #{conditional_vae_forward.1} parent=0 // pred_check_branch
    %31 = sbr.rel (0) target = $region25
  $region24: #{conditional_vae_forward.1} parent=0 // pred_region
    _
  $region25: #{conditional_vae_forward.1} parent=0 // pred_fallthru
    _
  // Predicated region
  $region26: #{conditional_vae_forward.1} parent=0 // pred_check
    _
  $region27: #{conditional_vae_forward.1} parent=0 // pred_check_branch
    %33 = sbr.rel (0) target = $region29
  $region28: #{conditional_vae_forward.1} parent=0 // pred_region
    _
  $region29: #{conditional_vae_forward.1} parent=0 // pred_fallthru
    _
  // Predicated region
  $region30: #{conditional_vae_forward.1} parent=0 // pred_check
    _
  $region31: #{conditional_vae_forward.1} parent=0 // pred_check_branch
    %35 = sbr.rel (0) target = $region33
  $region32: #{conditional_vae_forward.1} parent=0 // pred_region
    _
  $region33: #{conditional_vae_forward.1} parent=0 // pred_fallthru
    _
  // Predicated region
  $region34: #{conditional_vae_forward.1} parent=0 // pred_check
    _
  $region35: #{conditional_vae_forward.1} parent=0 // pred_check_branch
    %37 = sbr.rel (0) target = $region37
  $region36: #{conditional_vae_forward.1} parent=0 // pred_region
    _
  $region37: #{conditional_vae_forward.1} parent=0 // pred_fallthru
    _
  // Predicated region
  $region38: #{conditional_vae_forward.1} parent=0 // pred_check
    _
  $region39: #{conditional_vae_forward.1} parent=0 // pred_check_branch
    %39 = sbr.rel (0) target = $region41
  $region40: #{conditional_vae_forward.1} parent=0 // pred_region
    _
  $region41: #{conditional_vae_forward.1} parent=0 // pred_fallthru
    _
  // Predicated region
  $region42: #{conditional_vae_forward.1} parent=0 // pred_check
    _
  $region43: #{conditional_vae_forward.1} parent=0 // pred_check_branch
    %41 = sbr.rel (0) target = $region45
  $region44: #{conditional_vae_forward.1} parent=0 // pred_region
    _
  $region45: #{conditional_vae_forward.1} parent=0 // pred_fallthru
    _
  // Predicated region
  $region46: #{conditional_vae_forward.1} parent=0 // pred_check
    _
  $region47: #{conditional_vae_forward.1} parent=0 // pred_check_branch
    %43 = sbr.rel (0) target = $region49
  $region48: #{conditional_vae_forward.1} parent=0 // pred_region
    _
  $region49: #{conditional_vae_forward.1} parent=0 // pred_fallthru
    _
  // Predicated region
  $region50: #{conditional_vae_forward.1} parent=0 // pred_check
    _
  $region51: #{conditional_vae_forward.1} parent=0 // pred_check_branch
    %45 = sbr.rel (0) target = $region53
  $region52: #{conditional_vae_forward.1} parent=0 // pred_region
    _
  $region53: #{conditional_vae_forward.1} parent=0 // pred_fallthru
    _
  %v46 = vld [vmem:[%s0] sm:$0xff]
  %v47 = vpack.c.bf16 %v46, %v46
  %v48 = vld [vmem:[%s1] sm:$0xff]
  %v49 = vpack.c.bf16 %v48, %v48
  %v50 = vld [vmem:[%s3] sm:$0xff]
  %v51 = vld [vmem:[%s3 + $0x8] sm:$0xff]
  %v52 = vld [vmem:[%s3 + $0x10] sm:$0xff]
  %v53 = vld [vmem:[%s3 + $0x18] sm:$0xff]
  %v54 = vld [vmem:[%s3 + $0x20] sm:$0xff]
  %v55 = vld [vmem:[%s3 + $0x28] sm:$0xff]
  %v56 = vld [vmem:[%s3 + $0x30] sm:$0xff]
  %v57 = vld [vmem:[%s3 + $0x38] sm:$0xff]
  %v58 = vld [vmem:[%s3 + $0x40] sm:$0xff]
  %v59 = vld [vmem:[%s3 + $0x48] sm:$0xff]
  %v60 = vld [vmem:[%s3 + $0x50] sm:$0xff]
  %v61 = vld [vmem:[%s3 + $0x58] sm:$0xff]
  %v62 = vld [vmem:[%s3 + $0x60] sm:$0xff]
  %v63 = vld [vmem:[%s3 + $0x68] sm:$0xff]
  %v64 = vld [vmem:[%s3 + $0x70] sm:$0xff]
  %v65 = vld [vmem:[%s3 + $0x78] sm:$0xff]
  %v66 = vld [vmem:[%s3 + $0x80] sm:$0xff]
  %v67 = vld [vmem:[%s3 + $0x88] sm:$0xff]
  %v68 = vld [vmem:[%s3 + $0x90] sm:$0xff]
  %v69 = vld [vmem:[%s3 + $0x98] sm:$0xff]
  %v70 = vld [vmem:[%s3 + $0xa0] sm:$0xff]
  %v71 = vld [vmem:[%s3 + $0xa8] sm:$0xff]
  %v72 = vld [vmem:[%s3 + $0xb0] sm:$0xff]
  %v73 = vld [vmem:[%s3 + $0xb8] sm:$0xff]
  %v74 = vld [vmem:[%s3 + $0xc0] sm:$0xff]
  %v75 = vld [vmem:[%s3 + $0xc8] sm:$0xff]
  %v76 = vld [vmem:[%s3 + $0xd0] sm:$0xff]
  %v77 = vld [vmem:[%s3 + $0xd8] sm:$0xff]
  %v78 = vld [vmem:[%s3 + $0xe0] sm:$0xff]
  %v79 = vld [vmem:[%s3 + $0xe8] sm:$0xff]
  %v80 = vld [vmem:[%s3 + $0xf0] sm:$0xff]
  %v81 = vld [vmem:[%s3 + $0xf8] sm:$0xff]
  %v82 = vld [vmem:[%s4] sm:$0xff]
  %v83 = vld [vmem:[%s4 + $0x8] sm:$0xff]
  %v84 = vld [vmem:[%s4 + $0x10] sm:$0xff]
  %v85 = vld [vmem:[%s4 + $0x18] sm:$0xff]
  %v86 = vld [vmem:[%s4 + $0x20] sm:$0xff]
  %v87 = vld [vmem:[%s4 + $0x28] sm:$0xff]
  %v88 = vld [vmem:[%s4 + $0x30] sm:$0xff]
  %v89 = vld [vmem:[%s4 + $0x38] sm:$0xff]
  %v90 = vld [vmem:[%s4 + $0x40] sm:$0xff]
  %v91 = vld [vmem:[%s4 + $0x48] sm:$0xff]
  %v92 = vld [vmem:[%s4 + $0x50] sm:$0xff]
  %v93 = vld [vmem:[%s4 + $0x58] sm:$0xff]
  %v94 = vld [vmem:[%s4 + $0x60] sm:$0xff]
  %v95 = vld [vmem:[%s4 + $0x68] sm:$0xff]
  %v96 = vld [vmem:[%s4 + $0x70] sm:$0xff]
  %v97 = vld [vmem:[%s4 + $0x78] sm:$0xff]
  %v98 = vld [vmem:[%s4 + $0x80] sm:$0xff]
  %v99 = vld [vmem:[%s4 + $0x88] sm:$0xff]
  %v100 = vld [vmem:[%s4 + $0x90] sm:$0xff]
  %v101 = vld [vmem:[%s4 + $0x98] sm:$0xff]
  %v102 = vld [vmem:[%s4 + $0xa0] sm:$0xff]
  %v103 = vld [vmem:[%s4 + $0xa8] sm:$0xff]
  %v104 = vld [vmem:[%s4 + $0xb0] sm:$0xff]
  %v105 = vld [vmem:[%s4 + $0xb8] sm:$0xff]
  %v106 = vld [vmem:[%s4 + $0xc0] sm:$0xff]
  %v107 = vld [vmem:[%s4 + $0xc8] sm:$0xff]
  %v108 = vld [vmem:[%s4 + $0xd0] sm:$0xff]
  %v109 = vld [vmem:[%s4 + $0xd8] sm:$0xff]
  %v110 = vld [vmem:[%s4 + $0xe0] sm:$0xff]
  %v111 = vld [vmem:[%s4 + $0xe8] sm:$0xff]
  %v112 = vld [vmem:[%s4 + $0xf0] sm:$0xff]
  %v113 = vld [vmem:[%s4 + $0xf8] sm:$0xff]
  %v146 = vunpack.c.l.b16 %v82
  %v147 = vunpack.c.h.b16 %v82
  %v148 = vunpack.c.l.b16 %v83
  %v149 = vunpack.c.h.b16 %v83
  %v150 = vunpack.c.l.b16 %v84
  %v151 = vunpack.c.h.b16 %v84
  %v152 = vunpack.c.l.b16 %v85
  %v153 = vunpack.c.h.b16 %v85
  %v154 = vunpack.c.l.b16 %v86
  %v155 = vunpack.c.h.b16 %v86
  %v156 = vunpack.c.l.b16 %v87
  %v157 = vunpack.c.h.b16 %v87
  %v158 = vunpack.c.l.b16 %v88
  %v159 = vunpack.c.h.b16 %v88
  %v160 = vunpack.c.l.b16 %v89
  %v161 = vunpack.c.h.b16 %v89
  %v162 = vunpack.c.l.b16 %v90
  %v163 = vunpack.c.h.b16 %v90
  %v164 = vunpack.c.l.b16 %v91
  %v165 = vunpack.c.h.b16 %v91
  %v166 = vunpack.c.l.b16 %v92
  %v167 = vunpack.c.h.b16 %v92
  %v168 = vunpack.c.l.b16 %v93
  %v169 = vunpack.c.h.b16 %v93
  %v170 = vunpack.c.l.b16 %v94
  %v171 = vunpack.c.h.b16 %v94
  %v172 = vunpack.c.l.b16 %v95
  %v173 = vunpack.c.h.b16 %v95
  %v174 = vunpack.c.l.b16 %v96
  %v175 = vunpack.c.h.b16 %v96
  %v176 = vunpack.c.l.b16 %v97
  %v177 = vunpack.c.h.b16 %v97
  %v178 = vunpack.c.l.b16 %v98
  %v179 = vunpack.c.h.b16 %v98
  %v180 = vunpack.c.l.b16 %v99
  %v181 = vunpack.c.h.b16 %v99
  %v182 = vunpack.c.l.b16 %v100
  %v183 = vunpack.c.h.b16 %v100
  %v184 = vunpack.c.l.b16 %v101
  %v185 = vunpack.c.h.b16 %v101
  %v186 = vunpack.c.l.b16 %v102
  %v187 = vunpack.c.h.b16 %v102
  %v188 = vunpack.c.l.b16 %v103
  %v189 = vunpack.c.h.b16 %v103
  %v190 = vunpack.c.l.b16 %v104
  %v191 = vunpack.c.h.b16 %v104
  %v192 = vunpack.c.l.b16 %v105
  %v193 = vunpack.c.h.b16 %v105
  %v194 = vunpack.c.l.b16 %v106
  %v195 = vunpack.c.h.b16 %v106
  %v196 = vunpack.c.l.b16 %v107
  %v197 = vunpack.c.h.b16 %v107
  %v198 = vunpack.c.l.b16 %v108
  %v199 = vunpack.c.h.b16 %v108
  %v200 = vunpack.c.l.b16 %v109
  %v201 = vunpack.c.h.b16 %v109
  %v202 = vunpack.c.l.b16 %v110
  %v203 = vunpack.c.h.b16 %v110
  %v204 = vunpack.c.l.b16 %v111
  %v205 = vunpack.c.h.b16 %v111
  %v206 = vunpack.c.l.b16 %v112
  %v207 = vunpack.c.h.b16 %v112
  %v208 = vunpack.c.l.b16 %v113
  %v209 = vunpack.c.h.b16 %v113
  %v210 = vpack.c.b16 %v150, %v146
  %v211 = vpack.c.b16 %v151, %v147
  %v212 = vpack.c.b16 %v152, %v148
  %v213 = vpack.c.b16 %v153, %v149
  %v214 = vpack.c.b16 %v158, %v154
  %v215 = vpack.c.b16 %v159, %v155
  %v216 = vpack.c.b16 %v160, %v156
  %v217 = vpack.c.b16 %v161, %v157
  %v218 = vpack.c.b16 %v166, %v162
  %v219 = vpack.c.b16 %v167, %v163
  %v220 = vpack.c.b16 %v168, %v164
  %v221 = vpack.c.b16 %v169, %v165
  %v222 = vpack.c.b16 %v174, %v170
  %v223 = vpack.c.b16 %v175, %v171
  %v224 = vpack.c.b16 %v176, %v172
  %v225 = vpack.c.b16 %v177, %v173
  %v226 = vpack.c.b16 %v182, %v178
  %v227 = vpack.c.b16 %v183, %v179
  %v228 = vpack.c.b16 %v184, %v180
  %v229 = vpack.c.b16 %v185, %v181
  %v230 = vpack.c.b16 %v190, %v186
  %v231 = vpack.c.b16 %v191, %v187
  %v232 = vpack.c.b16 %v192, %v188
  %v233 = vpack.c.b16 %v193, %v189
  %v234 = vpack.c.b16 %v198, %v194
  %v235 = vpack.c.b16 %v199, %v195
  %v236 = vpack.c.b16 %v200, %v196
  %v237 = vpack.c.b16 %v201, %v197
  %v238 = vpack.c.b16 %v206, %v202
  %v239 = vpack.c.b16 %v207, %v203
  %v240 = vpack.c.b16 %v208, %v204
  %v241 = vpack.c.b16 %v209, %v205
  %274 = vmatpush.bf16.msra.mxu0 %v238
  %275 = vmatpush.bf16.msra.mxu0 %v234
  %276 = vmatpush.bf16.msra.mxu0 %v230
  %277 = vmatpush.bf16.msra.mxu0 %v226
  %278 = vmatpush.bf16.msra.mxu0 %v222
  %279 = vmatpush.bf16.msra.mxu0 %v218
  %280 = vmatpush.bf16.msra.mxu0 %v214
  %281 = vmatpush.bf16.msra.mxu0 %v210
  %282 = vmatmul.bf16.gmra.mxu0 %v49
  %v283 = vpop.f32.mrf.mxu0
  %v284 = vadd.f32 0.0, %v283
  %v285 = vpop.f32.mrf.mxu0
  %286 = vdwg.mxu0
  %287 = vmatpush.bf16.msra.mxu0 %v239
  %288 = vmatpush.bf16.msra.mxu0 %v235
  %289 = vmatpush.bf16.msra.mxu0 %v231
  %290 = vmatpush.bf16.msra.mxu0 %v227
  %291 = vmatpush.bf16.msra.mxu0 %v223
  %292 = vmatpush.bf16.msra.mxu0 %v219
  %293 = vmatpush.bf16.msra.mxu0 %v215
  %294 = vmatpush.bf16.msra.mxu0 %v211
  %295 = vmatmul.bf16.gmra.mxu0 %v49
  %v296 = vpop.f32.mrf.mxu0
  %v297 = vadd.f32 0.0, %v296
  %v298 = vpop.f32.mrf.mxu0
  %299 = vdwg.mxu0
  %300 = vmatpush.bf16.msra.mxu0 %v240
  %301 = vmatpush.bf16.msra.mxu0 %v236
  %302 = vmatpush.bf16.msra.mxu0 %v232
  %303 = vmatpush.bf16.msra.mxu0 %v228
  %304 = vmatpush.bf16.msra.mxu0 %v224
  %305 = vmatpush.bf16.msra.mxu0 %v220
  %306 = vmatpush.bf16.msra.mxu0 %v216
  %307 = vmatpush.bf16.msra.mxu0 %v212
  %308 = vmatmul.bf16.gmra.mxu0 %v49
  %v309 = vpop.f32.mrf.mxu0
  %v310 = vadd.f32 0.0, %v309
  %v311 = vpop.f32.mrf.mxu0
  %312 = vdwg.mxu0
  %313 = vmatpush.bf16.msra.mxu0 %v241
  %314 = vmatpush.bf16.msra.mxu0 %v237
  %315 = vmatpush.bf16.msra.mxu0 %v233
  %316 = vmatpush.bf16.msra.mxu0 %v229
  %317 = vmatpush.bf16.msra.mxu0 %v225
  %318 = vmatpush.bf16.msra.mxu0 %v221
  %319 = vmatpush.bf16.msra.mxu0 %v217
  %320 = vmatpush.bf16.msra.mxu0 %v213
  %321 = vmatmul.bf16.gmra.mxu0 %v49
  %v322 = vpop.f32.mrf.mxu0
  %v323 = vadd.f32 0.0, %v322
  %v324 = vpop.f32.mrf.mxu0
  %325 = vdwg.mxu0
  %v358 = vunpack.c.l.b16 %v50
  %v359 = vunpack.c.h.b16 %v50
  %v360 = vunpack.c.l.b16 %v51
  %v361 = vunpack.c.h.b16 %v51
  %v362 = vunpack.c.l.b16 %v52
  %v363 = vunpack.c.h.b16 %v52
  %v364 = vunpack.c.l.b16 %v53
  %v365 = vunpack.c.h.b16 %v53
  %v366 = vunpack.c.l.b16 %v54
  %v367 = vunpack.c.h.b16 %v54
  %v368 = vunpack.c.l.b16 %v55
  %v369 = vunpack.c.h.b16 %v55
  %v370 = vunpack.c.l.b16 %v56
  %v371 = vunpack.c.h.b16 %v56
  %v372 = vunpack.c.l.b16 %v57
  %v373 = vunpack.c.h.b16 %v57
  %v374 = vunpack.c.l.b16 %v58
  %v375 = vunpack.c.h.b16 %v58
  %v376 = vunpack.c.l.b16 %v59
  %v377 = vunpack.c.h.b16 %v59
  %v378 = vunpack.c.l.b16 %v60
  %v379 = vunpack.c.h.b16 %v60
  %v380 = vunpack.c.l.b16 %v61
  %v381 = vunpack.c.h.b16 %v61
  %v382 = vunpack.c.l.b16 %v62
  %v383 = vunpack.c.h.b16 %v62
  %v384 = vunpack.c.l.b16 %v63
  %v385 = vunpack.c.h.b16 %v63
  %v386 = vunpack.c.l.b16 %v64
  %v387 = vunpack.c.h.b16 %v64
  %v388 = vunpack.c.l.b16 %v65
  %v389 = vunpack.c.h.b16 %v65
  %v390 = vunpack.c.l.b16 %v66
  %v391 = vunpack.c.h.b16 %v66
  %v392 = vunpack.c.l.b16 %v67
  %v393 = vunpack.c.h.b16 %v67
  %v394 = vunpack.c.l.b16 %v68
  %v395 = vunpack.c.h.b16 %v68
  %v396 = vunpack.c.l.b16 %v69
  %v397 = vunpack.c.h.b16 %v69
  %v398 = vunpack.c.l.b16 %v70
  %v399 = vunpack.c.h.b16 %v70
  %v400 = vunpack.c.l.b16 %v71
  %v401 = vunpack.c.h.b16 %v71
  %v402 = vunpack.c.l.b16 %v72
  %v403 = vunpack.c.h.b16 %v72
  %v404 = vunpack.c.l.b16 %v73
  %v405 = vunpack.c.h.b16 %v73
  %v406 = vunpack.c.l.b16 %v74
  %v407 = vunpack.c.h.b16 %v74
  %v408 = vunpack.c.l.b16 %v75
  %v409 = vunpack.c.h.b16 %v75
  %v410 = vunpack.c.l.b16 %v76
  %v411 = vunpack.c.h.b16 %v76
  %v412 = vunpack.c.l.b16 %v77
  %v413 = vunpack.c.h.b16 %v77
  %v414 = vunpack.c.l.b16 %v78
  %v415 = vunpack.c.h.b16 %v78
  %v416 = vunpack.c.l.b16 %v79
  %v417 = vunpack.c.h.b16 %v79
  %v418 = vunpack.c.l.b16 %v80
  %v419 = vunpack.c.h.b16 %v80
  %v420 = vunpack.c.l.b16 %v81
  %v421 = vunpack.c.h.b16 %v81
  %v422 = vpack.c.b16 %v362, %v358
  %v423 = vpack.c.b16 %v363, %v359
  %v424 = vpack.c.b16 %v364, %v360
  %v425 = vpack.c.b16 %v365, %v361
  %v426 = vpack.c.b16 %v370, %v366
  %v427 = vpack.c.b16 %v371, %v367
  %v428 = vpack.c.b16 %v372, %v368
  %v429 = vpack.c.b16 %v373, %v369
  %v430 = vpack.c.b16 %v378, %v374
  %v431 = vpack.c.b16 %v379, %v375
  %v432 = vpack.c.b16 %v380, %v376
  %v433 = vpack.c.b16 %v381, %v377
  %v434 = vpack.c.b16 %v386, %v382
  %v435 = vpack.c.b16 %v387, %v383
  %v436 = vpack.c.b16 %v388, %v384
  %v437 = vpack.c.b16 %v389, %v385
  %v438 = vpack.c.b16 %v394, %v390
  %v439 = vpack.c.b16 %v395, %v391
  %v440 = vpack.c.b16 %v396, %v392
  %v441 = vpack.c.b16 %v397, %v393
  %v442 = vpack.c.b16 %v402, %v398
  %v443 = vpack.c.b16 %v403, %v399
  %v444 = vpack.c.b16 %v404, %v400
  %v445 = vpack.c.b16 %v405, %v401
  %v446 = vpack.c.b16 %v410, %v406
  %v447 = vpack.c.b16 %v411, %v407
  %v448 = vpack.c.b16 %v412, %v408
  %v449 = vpack.c.b16 %v413, %v409
  %v450 = vpack.c.b16 %v418, %v414
  %v451 = vpack.c.b16 %v419, %v415
  %v452 = vpack.c.b16 %v420, %v416
  %v453 = vpack.c.b16 %v421, %v417
  %486 = vmatpush.bf16.msra.mxu0 %v450
  %487 = vmatpush.bf16.msra.mxu0 %v446
  %488 = vmatpush.bf16.msra.mxu0 %v442
  %489 = vmatpush.bf16.msra.mxu0 %v438
  %490 = vmatpush.bf16.msra.mxu0 %v434
  %491 = vmatpush.bf16.msra.mxu0 %v430
  %492 = vmatpush.bf16.msra.mxu0 %v426
  %493 = vmatpush.bf16.msra.mxu0 %v422
  %494 = vmatmul.bf16.gmra.mxu0 %v47
  %v495 = vpop.f32.mrf.mxu0
  %v496 = vadd.f32 %v284, %v495
  %v497 = vpop.f32.mrf.mxu0
  %498 = vdwg.mxu0
  %499 = vmatpush.bf16.msra.mxu0 %v451
  %500 = vmatpush.bf16.msra.mxu0 %v447
  %501 = vmatpush.bf16.msra.mxu0 %v443
  %502 = vmatpush.bf16.msra.mxu0 %v439
  %503 = vmatpush.bf16.msra.mxu0 %v435
  %504 = vmatpush.bf16.msra.mxu0 %v431
  %505 = vmatpush.bf16.msra.mxu0 %v427
  %506 = vmatpush.bf16.msra.mxu0 %v423
  %507 = vmatmul.bf16.gmra.mxu0 %v47
  %v508 = vpop.f32.mrf.mxu0
  %v509 = vadd.f32 %v297, %v508
  %v510 = vpop.f32.mrf.mxu0
  %511 = vdwg.mxu0
  %512 = vmatpush.bf16.msra.mxu0 %v452
  %513 = vmatpush.bf16.msra.mxu0 %v448
  %514 = vmatpush.bf16.msra.mxu0 %v444
  %515 = vmatpush.bf16.msra.mxu0 %v440
  %516 = vmatpush.bf16.msra.mxu0 %v436
  %517 = vmatpush.bf16.msra.mxu0 %v432
  %518 = vmatpush.bf16.msra.mxu0 %v428
  %519 = vmatpush.bf16.msra.mxu0 %v424
  %520 = vmatmul.bf16.gmra.mxu0 %v47
  %v521 = vpop.f32.mrf.mxu0
  %v522 = vadd.f32 %v310, %v521
  %v523 = vpop.f32.mrf.mxu0
  %524 = vdwg.mxu0
  %525 = vmatpush.bf16.msra.mxu0 %v453
  %526 = vmatpush.bf16.msra.mxu0 %v449
  %527 = vmatpush.bf16.msra.mxu0 %v445
  %528 = vmatpush.bf16.msra.mxu0 %v441
  %529 = vmatpush.bf16.msra.mxu0 %v437
  %530 = vmatpush.bf16.msra.mxu0 %v433
  %531 = vmatpush.bf16.msra.mxu0 %v429
  %532 = vmatpush.bf16.msra.mxu0 %v425
  %533 = vmatmul.bf16.gmra.mxu0 %v47
  %v534 = vpop.f32.mrf.mxu0
  %v535 = vadd.f32 %v323, %v534
  %v536 = vpop.f32.mrf.mxu0
  %537 = vdwg.mxu0
  %v538 = vld [vmem:[%s5] sm:$0xf]
  %v540 = vperm.slane %v538, 0
  %v541 = vperm.slane %v538, 1
  %v542 = vperm.slane %v538, 2
  %v543 = vperm.slane %v538, 3
  %v548 = vadd.f32 %v496, %v540
  %v549 = vadd.f32 %v509, %v541
  %v550 = vadd.f32 %v522, %v542
  %v551 = vadd.f32 %v535, %v543
  %v552 = vmax.f32 %v548, 0.0
  %v553 = vmax.f32 %v549, 0.0
  %v554 = vmax.f32 %v550, 0.0
  %v555 = vmax.f32 %v551, 0.0
  %v556 = vpack.c.bf16 %v552, %v552
  %v557 = vpack.c.bf16 %v553, %v553
  %v558 = vpack.c.bf16 %v554, %v554
  %v559 = vpack.c.bf16 %v555, %v555
  %v560 = vld [vmem:[%s6] sm:$0xff]
  %v561 = vld [vmem:[%s6 + $0x8] sm:$0xff]
  %v562 = vld [vmem:[%s6 + $0x10] sm:$0xff]
  %v563 = vld [vmem:[%s6 + $0x18] sm:$0xff]
  %v564 = vld [vmem:[%s6 + $0x20] sm:$0xff]
  %v565 = vld [vmem:[%s6 + $0x28] sm:$0xff]
  %v566 = vld [vmem:[%s6 + $0x30] sm:$0xff]
  %v567 = vld [vmem:[%s6 + $0x38] sm:$0xff]
  %v568 = vld [vmem:[%s6 + $0x40] sm:$0xff]
  %v569 = vld [vmem:[%s6 + $0x48] sm:$0xff]
  %v570 = vld [vmem:[%s6 + $0x50] sm:$0xff]
  %v571 = vld [vmem:[%s6 + $0x58] sm:$0xff]
  %v572 = vld [vmem:[%s6 + $0x60] sm:$0xff]
  %v573 = vld [vmem:[%s6 + $0x68] sm:$0xff]
  %v574 = vld [vmem:[%s6 + $0x70] sm:$0xff]
  %v575 = vld [vmem:[%s6 + $0x78] sm:$0xff]
  %v576 = vld [vmem:[%s6 + $0x80] sm:$0xff]
  %v577 = vld [vmem:[%s6 + $0x88] sm:$0xff]
  %v578 = vld [vmem:[%s6 + $0x90] sm:$0xff]
  %v579 = vld [vmem:[%s6 + $0x98] sm:$0xff]
  %v580 = vld [vmem:[%s6 + $0xa0] sm:$0xff]
  %v581 = vld [vmem:[%s6 + $0xa8] sm:$0xff]
  %v582 = vld [vmem:[%s6 + $0xb0] sm:$0xff]
  %v583 = vld [vmem:[%s6 + $0xb8] sm:$0xff]
  %v584 = vld [vmem:[%s6 + $0xc0] sm:$0xff]
  %v585 = vld [vmem:[%s6 + $0xc8] sm:$0xff]
  %v586 = vld [vmem:[%s6 + $0xd0] sm:$0xff]
  %v587 = vld [vmem:[%s6 + $0xd8] sm:$0xff]
  %v588 = vld [vmem:[%s6 + $0xe0] sm:$0xff]
  %v589 = vld [vmem:[%s6 + $0xe8] sm:$0xff]
  %v590 = vld [vmem:[%s6 + $0xf0] sm:$0xff]
  %v591 = vld [vmem:[%s6 + $0xf8] sm:$0xff]
  %v592 = vld [vmem:[%s6 + $0x100] sm:$0xff]
  %v593 = vld [vmem:[%s6 + $0x108] sm:$0xff]
  %v594 = vld [vmem:[%s6 + $0x110] sm:$0xff]
  %v595 = vld [vmem:[%s6 + $0x118] sm:$0xff]
  %v596 = vld [vmem:[%s6 + $0x120] sm:$0xff]
  %v597 = vld [vmem:[%s6 + $0x128] sm:$0xff]
  %v598 = vld [vmem:[%s6 + $0x130] sm:$0xff]
  %v599 = vld [vmem:[%s6 + $0x138] sm:$0xff]
  %v600 = vld [vmem:[%s6 + $0x140] sm:$0xff]
  %v601 = vld [vmem:[%s6 + $0x148] sm:$0xff]
  %v602 = vld [vmem:[%s6 + $0x150] sm:$0xff]
  %v603 = vld [vmem:[%s6 + $0x158] sm:$0xff]
  %v604 = vld [vmem:[%s6 + $0x160] sm:$0xff]
  %v605 = vld [vmem:[%s6 + $0x168] sm:$0xff]
  %v606 = vld [vmem:[%s6 + $0x170] sm:$0xff]
  %v607 = vld [vmem:[%s6 + $0x178] sm:$0xff]
  %v608 = vld [vmem:[%s6 + $0x180] sm:$0xff]
  %v609 = vld [vmem:[%s6 + $0x188] sm:$0xff]
  %v610 = vld [vmem:[%s6 + $0x190] sm:$0xff]
  %v611 = vld [vmem:[%s6 + $0x198] sm:$0xff]
  %v612 = vld [vmem:[%s6 + $0x1a0] sm:$0xff]
  %v613 = vld [vmem:[%s6 + $0x1a8] sm:$0xff]
  %v614 = vld [vmem:[%s6 + $0x1b0] sm:$0xff]
  %v615 = vld [vmem:[%s6 + $0x1b8] sm:$0xff]
  %v616 = vld [vmem:[%s6 + $0x1c0] sm:$0xff]
  %v617 = vld [vmem:[%s6 + $0x1c8] sm:$0xff]
  %v618 = vld [vmem:[%s6 + $0x1d0] sm:$0xff]
  %v619 = vld [vmem:[%s6 + $0x1d8] sm:$0xff]
  %v620 = vld [vmem:[%s6 + $0x1e0] sm:$0xff]
  %v621 = vld [vmem:[%s6 + $0x1e8] sm:$0xff]
  %v622 = vld [vmem:[%s6 + $0x1f0] sm:$0xff]
  %v623 = vld [vmem:[%s6 + $0x1f8] sm:$0xff]
  %v624 = vld [vmem:[%s7] sm:$0x3]
  %v626 = vperm.slane %v624, 0
  %v627 = vperm.slane %v624, 1
  %v694 = vunpack.c.l.b16 %v560
  %v695 = vunpack.c.h.b16 %v560
  %v696 = vunpack.c.l.b16 %v561
  %v697 = vunpack.c.h.b16 %v561
  %v698 = vunpack.c.l.b16 %v562
  %v699 = vunpack.c.h.b16 %v562
  %v700 = vunpack.c.l.b16 %v563
  %v701 = vunpack.c.h.b16 %v563
  %v702 = vunpack.c.l.b16 %v564
  %v703 = vunpack.c.h.b16 %v564
  %v704 = vunpack.c.l.b16 %v565
  %v705 = vunpack.c.h.b16 %v565
  %v706 = vunpack.c.l.b16 %v566
  %v707 = vunpack.c.h.b16 %v566
  %v708 = vunpack.c.l.b16 %v567
  %v709 = vunpack.c.h.b16 %v567
  %v710 = vunpack.c.l.b16 %v568
  %v711 = vunpack.c.h.b16 %v568
  %v712 = vunpack.c.l.b16 %v569
  %v713 = vunpack.c.h.b16 %v569
  %v714 = vunpack.c.l.b16 %v570
  %v715 = vunpack.c.h.b16 %v570
  %v716 = vunpack.c.l.b16 %v571
  %v717 = vunpack.c.h.b16 %v571
  %v718 = vunpack.c.l.b16 %v572
  %v719 = vunpack.c.h.b16 %v572
  %v720 = vunpack.c.l.b16 %v573
  %v721 = vunpack.c.h.b16 %v573
  %v722 = vunpack.c.l.b16 %v574
  %v723 = vunpack.c.h.b16 %v574
  %v724 = vunpack.c.l.b16 %v575
  %v725 = vunpack.c.h.b16 %v575
  %v726 = vunpack.c.l.b16 %v576
  %v727 = vunpack.c.h.b16 %v576
  %v728 = vunpack.c.l.b16 %v577
  %v729 = vunpack.c.h.b16 %v577
  %v730 = vunpack.c.l.b16 %v578
  %v731 = vunpack.c.h.b16 %v578
  %v732 = vunpack.c.l.b16 %v579
  %v733 = vunpack.c.h.b16 %v579
  %v734 = vunpack.c.l.b16 %v580
  %v735 = vunpack.c.h.b16 %v580
  %v736 = vunpack.c.l.b16 %v581
  %v737 = vunpack.c.h.b16 %v581
  %v738 = vunpack.c.l.b16 %v582
  %v739 = vunpack.c.h.b16 %v582
  %v740 = vunpack.c.l.b16 %v583
  %v741 = vunpack.c.h.b16 %v583
  %v742 = vunpack.c.l.b16 %v584
  %v743 = vunpack.c.h.b16 %v584
  %v744 = vunpack.c.l.b16 %v585
  %v745 = vunpack.c.h.b16 %v585
  %v746 = vunpack.c.l.b16 %v586
  %v747 = vunpack.c.h.b16 %v586
  %v748 = vunpack.c.l.b16 %v587
  %v749 = vunpack.c.h.b16 %v587
  %v750 = vunpack.c.l.b16 %v588
  %v751 = vunpack.c.h.b16 %v588
  %v752 = vunpack.c.l.b16 %v589
  %v753 = vunpack.c.h.b16 %v589
  %v754 = vunpack.c.l.b16 %v590
  %v755 = vunpack.c.h.b16 %v590
  %v756 = vunpack.c.l.b16 %v591
  %v757 = vunpack.c.h.b16 %v591
  %v758 = vunpack.c.l.b16 %v592
  %v759 = vunpack.c.h.b16 %v592
  %v760 = vunpack.c.l.b16 %v593
  %v761 = vunpack.c.h.b16 %v593
  %v762 = vunpack.c.l.b16 %v594
  %v763 = vunpack.c.h.b16 %v594
  %v764 = vunpack.c.l.b16 %v595
  %v765 = vunpack.c.h.b16 %v595
  %v766 = vunpack.c.l.b16 %v596
  %v767 = vunpack.c.h.b16 %v596
  %v768 = vunpack.c.l.b16 %v597
  %v769 = vunpack.c.h.b16 %v597
  %v770 = vunpack.c.l.b16 %v598
  %v771 = vunpack.c.h.b16 %v598
  %v772 = vunpack.c.l.b16 %v599
  %v773 = vunpack.c.h.b16 %v599
  %v774 = vunpack.c.l.b16 %v600
  %v775 = vunpack.c.h.b16 %v600
  %v776 = vunpack.c.l.b16 %v601
  %v777 = vunpack.c.h.b16 %v601
  %v778 = vunpack.c.l.b16 %v602
  %v779 = vunpack.c.h.b16 %v602
  %v780 = vunpack.c.l.b16 %v603
  %v781 = vunpack.c.h.b16 %v603
  %v782 = vunpack.c.l.b16 %v604
  %v783 = vunpack.c.h.b16 %v604
  %v784 = vunpack.c.l.b16 %v605
  %v785 = vunpack.c.h.b16 %v605
  %v786 = vunpack.c.l.b16 %v606
  %v787 = vunpack.c.h.b16 %v606
  %v788 = vunpack.c.l.b16 %v607
  %v789 = vunpack.c.h.b16 %v607
  %v790 = vunpack.c.l.b16 %v608
  %v791 = vunpack.c.h.b16 %v608
  %v792 = vunpack.c.l.b16 %v609
  %v793 = vunpack.c.h.b16 %v609
  %v794 = vunpack.c.l.b16 %v610
  %v795 = vunpack.c.h.b16 %v610
  %v796 = vunpack.c.l.b16 %v611
  %v797 = vunpack.c.h.b16 %v611
  %v798 = vunpack.c.l.b16 %v612
  %v799 = vunpack.c.h.b16 %v612
  %v800 = vunpack.c.l.b16 %v613
  %v801 = vunpack.c.h.b16 %v613
  %v802 = vunpack.c.l.b16 %v614
  %v803 = vunpack.c.h.b16 %v614
  %v804 = vunpack.c.l.b16 %v615
  %v805 = vunpack.c.h.b16 %v615
  %v806 = vunpack.c.l.b16 %v616
  %v807 = vunpack.c.h.b16 %v616
  %v808 = vunpack.c.l.b16 %v617
  %v809 = vunpack.c.h.b16 %v617
  %v810 = vunpack.c.l.b16 %v618
  %v811 = vunpack.c.h.b16 %v618
  %v812 = vunpack.c.l.b16 %v619
  %v813 = vunpack.c.h.b16 %v619
  %v814 = vunpack.c.l.b16 %v620
  %v815 = vunpack.c.h.b16 %v620
  %v816 = vunpack.c.l.b16 %v621
  %v817 = vunpack.c.h.b16 %v621
  %v818 = vunpack.c.l.b16 %v622
  %v819 = vunpack.c.h.b16 %v622
  %v820 = vunpack.c.l.b16 %v623
  %v821 = vunpack.c.h.b16 %v623
  %v822 = vpack.c.b16 %v696, %v694
  %v823 = vpack.c.b16 %v697, %v695
  %v824 = vpack.c.b16 %v700, %v698
  %v825 = vpack.c.b16 %v701, %v699
  %v826 = vpack.c.b16 %v704, %v702
  %v827 = vpack.c.b16 %v705, %v703
  %v828 = vpack.c.b16 %v708, %v706
  %v829 = vpack.c.b16 %v709, %v707
  %v830 = vpack.c.b16 %v712, %v710
  %v831 = vpack.c.b16 %v713, %v711
  %v832 = vpack.c.b16 %v716, %v714
  %v833 = vpack.c.b16 %v717, %v715
  %v834 = vpack.c.b16 %v720, %v718
  %v835 = vpack.c.b16 %v721, %v719
  %v836 = vpack.c.b16 %v724, %v722
  %v837 = vpack.c.b16 %v725, %v723
  %v838 = vpack.c.b16 %v728, %v726
  %v839 = vpack.c.b16 %v729, %v727
  %v840 = vpack.c.b16 %v732, %v730
  %v841 = vpack.c.b16 %v733, %v731
  %v842 = vpack.c.b16 %v736, %v734
  %v843 = vpack.c.b16 %v737, %v735
  %v844 = vpack.c.b16 %v740, %v738
  %v845 = vpack.c.b16 %v741, %v739
  %v846 = vpack.c.b16 %v744, %v742
  %v847 = vpack.c.b16 %v745, %v743
  %v848 = vpack.c.b16 %v748, %v746
  %v849 = vpack.c.b16 %v749, %v747
  %v850 = vpack.c.b16 %v752, %v750
  %v851 = vpack.c.b16 %v753, %v751
  %v852 = vpack.c.b16 %v756, %v754
  %v853 = vpack.c.b16 %v757, %v755
  %v854 = vpack.c.b16 %v760, %v758
  %v855 = vpack.c.b16 %v761, %v759
  %v856 = vpack.c.b16 %v764, %v762
  %v857 = vpack.c.b16 %v765, %v763
  %v858 = vpack.c.b16 %v768, %v766
  %v859 = vpack.c.b16 %v769, %v767
  %v860 = vpack.c.b16 %v772, %v770
  %v861 = vpack.c.b16 %v773, %v771
  %v862 = vpack.c.b16 %v776, %v774
  %v863 = vpack.c.b16 %v777, %v775
  %v864 = vpack.c.b16 %v780, %v778
  %v865 = vpack.c.b16 %v781, %v779
  %v866 = vpack.c.b16 %v784, %v782
  %v867 = vpack.c.b16 %v785, %v783
  %v868 = vpack.c.b16 %v788, %v786
  %v869 = vpack.c.b16 %v789, %v787
  %v870 = vpack.c.b16 %v792, %v790
  %v871 = vpack.c.b16 %v793, %v791
  %v872 = vpack.c.b16 %v796, %v794
  %v873 = vpack.c.b16 %v797, %v795
  %v874 = vpack.c.b16 %v800, %v798
  %v875 = vpack.c.b16 %v801, %v799
  %v876 = vpack.c.b16 %v804, %v802
  %v877 = vpack.c.b16 %v805, %v803
  %v878 = vpack.c.b16 %v808, %v806
  %v879 = vpack.c.b16 %v809, %v807
  %v880 = vpack.c.b16 %v812, %v810
  %v881 = vpack.c.b16 %v813, %v811
  %v882 = vpack.c.b16 %v816, %v814
  %v883 = vpack.c.b16 %v817, %v815
  %v884 = vpack.c.b16 %v820, %v818
  %v885 = vpack.c.b16 %v821, %v819
  %950 = vmatpush.bf16.msra.mxu0 %v836
  %951 = vmatpush.bf16.msra.mxu0 %v834
  %952 = vmatpush.bf16.msra.mxu0 %v832
  %953 = vmatpush.bf16.msra.mxu0 %v830
  %954 = vmatpush.bf16.msra.mxu0 %v828
  %955 = vmatpush.bf16.msra.mxu0 %v826
  %956 = vmatpush.bf16.msra.mxu0 %v824
  %957 = vmatpush.bf16.msra.mxu0 %v822
  %958 = vmatmul.bf16.gmra.mxu0 %v556
  %v959 = vpop.f32.mrf.mxu0
  %v960 = vadd.f32 %v626, %v959
  %v961 = vpop.f32.mrf.mxu0
  %962 = vdwg.mxu0
  %963 = vmatpush.bf16.msra.mxu0 %v852
  %964 = vmatpush.bf16.msra.mxu0 %v850
  %965 = vmatpush.bf16.msra.mxu0 %v848
  %966 = vmatpush.bf16.msra.mxu0 %v846
  %967 = vmatpush.bf16.msra.mxu0 %v844
  %968 = vmatpush.bf16.msra.mxu0 %v842
  %969 = vmatpush.bf16.msra.mxu0 %v840
  %970 = vmatpush.bf16.msra.mxu0 %v838
  %971 = vmatmul.bf16.gmra.mxu0 %v557
  %v972 = vpop.f32.mrf.mxu0
  %v973 = vadd.f32 %v960, %v972
  %v974 = vpop.f32.mrf.mxu0
  %975 = vdwg.mxu0
  %976 = vmatpush.bf16.msra.mxu0 %v868
  %977 = vmatpush.bf16.msra.mxu0 %v866
  %978 = vmatpush.bf16.msra.mxu0 %v864
  %979 = vmatpush.bf16.msra.mxu0 %v862
  %980 = vmatpush.bf16.msra.mxu0 %v860
  %981 = vmatpush.bf16.msra.mxu0 %v858
  %982 = vmatpush.bf16.msra.mxu0 %v856
  %983 = vmatpush.bf16.msra.mxu0 %v854
  %984 = vmatmul.bf16.gmra.mxu0 %v558
  %v985 = vpop.f32.mrf.mxu0
  %v986 = vadd.f32 %v973, %v985
  %v987 = vpop.f32.mrf.mxu0
  %988 = vdwg.mxu0
  %989 = vmatpush.bf16.msra.mxu0 %v884
  %990 = vmatpush.bf16.msra.mxu0 %v882
  %991 = vmatpush.bf16.msra.mxu0 %v880
  %992 = vmatpush.bf16.msra.mxu0 %v878
  %993 = vmatpush.bf16.msra.mxu0 %v876
  %994 = vmatpush.bf16.msra.mxu0 %v874
  %995 = vmatpush.bf16.msra.mxu0 %v872
  %996 = vmatpush.bf16.msra.mxu0 %v870
  %997 = vmatmul.bf16.gmra.mxu0 %v559
  %v998 = vpop.f32.mrf.mxu0
  %v999 = vadd.f32 %v986, %v998
  %v1000 = vpop.f32.mrf.mxu0
  %1001 = vdwg.mxu0
  %1002 = vmatpush.bf16.msra.mxu0 %v837
  %1003 = vmatpush.bf16.msra.mxu0 %v835
  %1004 = vmatpush.bf16.msra.mxu0 %v833
  %1005 = vmatpush.bf16.msra.mxu0 %v831
  %1006 = vmatpush.bf16.msra.mxu0 %v829
  %1007 = vmatpush.bf16.msra.mxu0 %v827
  %1008 = vmatpush.bf16.msra.mxu0 %v825
  %1009 = vmatpush.bf16.msra.mxu0 %v823
  %1010 = vmatmul.bf16.gmra.mxu0 %v556
  %v1011 = vpop.f32.mrf.mxu0
  %v1012 = vadd.f32 %v627, %v1011
  %v1013 = vpop.f32.mrf.mxu0
  %1014 = vdwg.mxu0
  %1015 = vmatpush.bf16.msra.mxu0 %v853
  %1016 = vmatpush.bf16.msra.mxu0 %v851
  %1017 = vmatpush.bf16.msra.mxu0 %v849
  %1018 = vmatpush.bf16.msra.mxu0 %v847
  %1019 = vmatpush.bf16.msra.mxu0 %v845
  %1020 = vmatpush.bf16.msra.mxu0 %v843
  %1021 = vmatpush.bf16.msra.mxu0 %v841
  %1022 = vmatpush.bf16.msra.mxu0 %v839
  %1023 = vmatmul.bf16.gmra.mxu0 %v557
  %v1024 = vpop.f32.mrf.mxu0
  %v1025 = vadd.f32 %v1012, %v1024
  %v1026 = vpop.f32.mrf.mxu0
  %1027 = vdwg.mxu0
  %1028 = vmatpush.bf16.msra.mxu0 %v869
  %1029 = vmatpush.bf16.msra.mxu0 %v867
  %1030 = vmatpush.bf16.msra.mxu0 %v865
  %1031 = vmatpush.bf16.msra.mxu0 %v863
  %1032 = vmatpush.bf16.msra.mxu0 %v861
  %1033 = vmatpush.bf16.msra.mxu0 %v859
  %1034 = vmatpush.bf16.msra.mxu0 %v857
  %1035 = vmatpush.bf16.msra.mxu0 %v855
  %1036 = vmatmul.bf16.gmra.mxu0 %v558
  %v1037 = vpop.f32.mrf.mxu0
  %v1038 = vadd.f32 %v1025, %v1037
  %v1039 = vpop.f32.mrf.mxu0
  %1040 = vdwg.mxu0
  %1041 = vmatpush.bf16.msra.mxu0 %v885
  %1042 = vmatpush.bf16.msra.mxu0 %v883
  %1043 = vmatpush.bf16.msra.mxu0 %v881
  %1044 = vmatpush.bf16.msra.mxu0 %v879
  %1045 = vmatpush.bf16.msra.mxu0 %v877
  %1046 = vmatpush.bf16.msra.mxu0 %v875
  %1047 = vmatpush.bf16.msra.mxu0 %v873
  %1048 = vmatpush.bf16.msra.mxu0 %v871
  %1049 = vmatmul.bf16.gmra.mxu0 %v559
  %v1050 = vpop.f32.mrf.mxu0
  %v1051 = vadd.f32 %v1038, %v1050
  %v1052 = vpop.f32.mrf.mxu0
  %1053 = vdwg.mxu0
  %1054 = vst [vmem:[%s14] sm:$0xff] %v999
  %1055 = vst [vmem:[%s14 + $0x8] sm:$0xff] %v1051
  %v1056 = vmul.f32 %v1051, 0.5
  %v1057 = vmul.f32 %v1056, 1.442695
  %v1058 = vpow.pop %v1057
  %v1059 = vld [vmem:[%s2] sm:$0x1]
  %v1061 = vperm.slane %v1059, 0
  %v1063 = vmul.f32 %v1061, %v1058
  %v1064 = vadd.f32 %v999, %v1063
  %v1065 = vpack.c.bf16 %v1064, %v1064
  %v1066 = vld [vmem:[%s8] sm:$0xff]
  %v1067 = vld [vmem:[%s8 + $0x8] sm:$0xff]
  %v1068 = vld [vmem:[%s8 + $0x10] sm:$0xff]
  %v1069 = vld [vmem:[%s8 + $0x18] sm:$0xff]
  %v1070 = vld [vmem:[%s8 + $0x20] sm:$0xff]
  %v1071 = vld [vmem:[%s8 + $0x28] sm:$0xff]
  %v1072 = vld [vmem:[%s8 + $0x30] sm:$0xff]
  %v1073 = vld [vmem:[%s8 + $0x38] sm:$0xff]
  %v1074 = vld [vmem:[%s8 + $0x40] sm:$0xff]
  %v1075 = vld [vmem:[%s8 + $0x48] sm:$0xff]
  %v1076 = vld [vmem:[%s8 + $0x50] sm:$0xff]
  %v1077 = vld [vmem:[%s8 + $0x58] sm:$0xff]
  %v1078 = vld [vmem:[%s8 + $0x60] sm:$0xff]
  %v1079 = vld [vmem:[%s8 + $0x68] sm:$0xff]
  %v1080 = vld [vmem:[%s8 + $0x70] sm:$0xff]
  %v1081 = vld [vmem:[%s8 + $0x78] sm:$0xff]
  %v1082 = vld [vmem:[%s8 + $0x80] sm:$0xff]
  %v1083 = vld [vmem:[%s8 + $0x88] sm:$0xff]
  %v1084 = vld [vmem:[%s8 + $0x90] sm:$0xff]
  %v1085 = vld [vmem:[%s8 + $0x98] sm:$0xff]
  %v1086 = vld [vmem:[%s8 + $0xa0] sm:$0xff]
  %v1087 = vld [vmem:[%s8 + $0xa8] sm:$0xff]
  %v1088 = vld [vmem:[%s8 + $0xb0] sm:$0xff]
  %v1089 = vld [vmem:[%s8 + $0xb8] sm:$0xff]
  %v1090 = vld [vmem:[%s8 + $0xc0] sm:$0xff]
  %v1091 = vld [vmem:[%s8 + $0xc8] sm:$0xff]
  %v1092 = vld [vmem:[%s8 + $0xd0] sm:$0xff]
  %v1093 = vld [vmem:[%s8 + $0xd8] sm:$0xff]
  %v1094 = vld [vmem:[%s8 + $0xe0] sm:$0xff]
  %v1095 = vld [vmem:[%s8 + $0xe8] sm:$0xff]
  %v1096 = vld [vmem:[%s8 + $0xf0] sm:$0xff]
  %v1097 = vld [vmem:[%s8 + $0xf8] sm:$0xff]
  %v1098 = vld [vmem:[%s9] sm:$0xff]
  %v1099 = vld [vmem:[%s9 + $0x8] sm:$0xff]
  %v1100 = vld [vmem:[%s9 + $0x10] sm:$0xff]
  %v1101 = vld [vmem:[%s9 + $0x18] sm:$0xff]
  %v1102 = vld [vmem:[%s9 + $0x20] sm:$0xff]
  %v1103 = vld [vmem:[%s9 + $0x28] sm:$0xff]
  %v1104 = vld [vmem:[%s9 + $0x30] sm:$0xff]
  %v1105 = vld [vmem:[%s9 + $0x38] sm:$0xff]
  %v1106 = vld [vmem:[%s9 + $0x40] sm:$0xff]
  %v1107 = vld [vmem:[%s9 + $0x48] sm:$0xff]
  %v1108 = vld [vmem:[%s9 + $0x50] sm:$0xff]
  %v1109 = vld [vmem:[%s9 + $0x58] sm:$0xff]
  %v1110 = vld [vmem:[%s9 + $0x60] sm:$0xff]
  %v1111 = vld [vmem:[%s9 + $0x68] sm:$0xff]
  %v1112 = vld [vmem:[%s9 + $0x70] sm:$0xff]
  %v1113 = vld [vmem:[%s9 + $0x78] sm:$0xff]
  %v1114 = vld [vmem:[%s9 + $0x80] sm:$0xff]
  %v1115 = vld [vmem:[%s9 + $0x88] sm:$0xff]
  %v1116 = vld [vmem:[%s9 + $0x90] sm:$0xff]
  %v1117 = vld [vmem:[%s9 + $0x98] sm:$0xff]
  %v1118 = vld [vmem:[%s9 + $0xa0] sm:$0xff]
  %v1119 = vld [vmem:[%s9 + $0xa8] sm:$0xff]
  %v1120 = vld [vmem:[%s9 + $0xb0] sm:$0xff]
  %v1121 = vld [vmem:[%s9 + $0xb8] sm:$0xff]
  %v1122 = vld [vmem:[%s9 + $0xc0] sm:$0xff]
  %v1123 = vld [vmem:[%s9 + $0xc8] sm:$0xff]
  %v1124 = vld [vmem:[%s9 + $0xd0] sm:$0xff]
  %v1125 = vld [vmem:[%s9 + $0xd8] sm:$0xff]
  %v1126 = vld [vmem:[%s9 + $0xe0] sm:$0xff]
  %v1127 = vld [vmem:[%s9 + $0xe8] sm:$0xff]
  %v1128 = vld [vmem:[%s9 + $0xf0] sm:$0xff]
  %v1129 = vld [vmem:[%s9 + $0xf8] sm:$0xff]
  %v1162 = vunpack.c.l.b16 %v1098
  %v1163 = vunpack.c.h.b16 %v1098
  %v1164 = vunpack.c.l.b16 %v1099
  %v1165 = vunpack.c.h.b16 %v1099
  %v1166 = vunpack.c.l.b16 %v1100
  %v1167 = vunpack.c.h.b16 %v1100
  %v1168 = vunpack.c.l.b16 %v1101
  %v1169 = vunpack.c.h.b16 %v1101
  %v1170 = vunpack.c.l.b16 %v1102
  %v1171 = vunpack.c.h.b16 %v1102
  %v1172 = vunpack.c.l.b16 %v1103
  %v1173 = vunpack.c.h.b16 %v1103
  %v1174 = vunpack.c.l.b16 %v1104
  %v1175 = vunpack.c.h.b16 %v1104
  %v1176 = vunpack.c.l.b16 %v1105
  %v1177 = vunpack.c.h.b16 %v1105
  %v1178 = vunpack.c.l.b16 %v1106
  %v1179 = vunpack.c.h.b16 %v1106
  %v1180 = vunpack.c.l.b16 %v1107
  %v1181 = vunpack.c.h.b16 %v1107
  %v1182 = vunpack.c.l.b16 %v1108
  %v1183 = vunpack.c.h.b16 %v1108
  %v1184 = vunpack.c.l.b16 %v1109
  %v1185 = vunpack.c.h.b16 %v1109
  %v1186 = vunpack.c.l.b16 %v1110
  %v1187 = vunpack.c.h.b16 %v1110
  %v1188 = vunpack.c.l.b16 %v1111
  %v1189 = vunpack.c.h.b16 %v1111
  %v1190 = vunpack.c.l.b16 %v1112
  %v1191 = vunpack.c.h.b16 %v1112
  %v1192 = vunpack.c.l.b16 %v1113
  %v1193 = vunpack.c.h.b16 %v1113
  %v1194 = vunpack.c.l.b16 %v1114
  %v1195 = vunpack.c.h.b16 %v1114
  %v1196 = vunpack.c.l.b16 %v1115
  %v1197 = vunpack.c.h.b16 %v1115
  %v1198 = vunpack.c.l.b16 %v1116
  %v1199 = vunpack.c.h.b16 %v1116
  %v1200 = vunpack.c.l.b16 %v1117
  %v1201 = vunpack.c.h.b16 %v1117
  %v1202 = vunpack.c.l.b16 %v1118
  %v1203 = vunpack.c.h.b16 %v1118
  %v1204 = vunpack.c.l.b16 %v1119
  %v1205 = vunpack.c.h.b16 %v1119
  %v1206 = vunpack.c.l.b16 %v1120
  %v1207 = vunpack.c.h.b16 %v1120
  %v1208 = vunpack.c.l.b16 %v1121
  %v1209 = vunpack.c.h.b16 %v1121
  %v1210 = vunpack.c.l.b16 %v1122
  %v1211 = vunpack.c.h.b16 %v1122
  %v1212 = vunpack.c.l.b16 %v1123
  %v1213 = vunpack.c.h.b16 %v1123
  %v1214 = vunpack.c.l.b16 %v1124
  %v1215 = vunpack.c.h.b16 %v1124
  %v1216 = vunpack.c.l.b16 %v1125
  %v1217 = vunpack.c.h.b16 %v1125
  %v1218 = vunpack.c.l.b16 %v1126
  %v1219 = vunpack.c.h.b16 %v1126
  %v1220 = vunpack.c.l.b16 %v1127
  %v1221 = vunpack.c.h.b16 %v1127
  %v1222 = vunpack.c.l.b16 %v1128
  %v1223 = vunpack.c.h.b16 %v1128
  %v1224 = vunpack.c.l.b16 %v1129
  %v1225 = vunpack.c.h.b16 %v1129
  %v1226 = vpack.c.b16 %v1166, %v1162
  %v1227 = vpack.c.b16 %v1167, %v1163
  %v1228 = vpack.c.b16 %v1168, %v1164
  %v1229 = vpack.c.b16 %v1169, %v1165
  %v1230 = vpack.c.b16 %v1174, %v1170
  %v1231 = vpack.c.b16 %v1175, %v1171
  %v1232 = vpack.c.b16 %v1176, %v1172
  %v1233 = vpack.c.b16 %v1177, %v1173
  %v1234 = vpack.c.b16 %v1182, %v1178
  %v1235 = vpack.c.b16 %v1183, %v1179
  %v1236 = vpack.c.b16 %v1184, %v1180
  %v1237 = vpack.c.b16 %v1185, %v1181
  %v1238 = vpack.c.b16 %v1190, %v1186
  %v1239 = vpack.c.b16 %v1191, %v1187
  %v1240 = vpack.c.b16 %v1192, %v1188
  %v1241 = vpack.c.b16 %v1193, %v1189
  %v1242 = vpack.c.b16 %v1198, %v1194
  %v1243 = vpack.c.b16 %v1199, %v1195
  %v1244 = vpack.c.b16 %v1200, %v1196
  %v1245 = vpack.c.b16 %v1201, %v1197
  %v1246 = vpack.c.b16 %v1206, %v1202
  %v1247 = vpack.c.b16 %v1207, %v1203
  %v1248 = vpack.c.b16 %v1208, %v1204
  %v1249 = vpack.c.b16 %v1209, %v1205
  %v1250 = vpack.c.b16 %v1214, %v1210
  %v1251 = vpack.c.b16 %v1215, %v1211
  %v1252 = vpack.c.b16 %v1216, %v1212
  %v1253 = vpack.c.b16 %v1217, %v1213
  %v1254 = vpack.c.b16 %v1222, %v1218
  %v1255 = vpack.c.b16 %v1223, %v1219
  %v1256 = vpack.c.b16 %v1224, %v1220
  %v1257 = vpack.c.b16 %v1225, %v1221
  %1290 = vmatpush.bf16.msra.mxu0 %v1254
  %1291 = vmatpush.bf16.msra.mxu0 %v1250
  %1292 = vmatpush.bf16.msra.mxu0 %v1246
  %1293 = vmatpush.bf16.msra.mxu0 %v1242
  %1294 = vmatpush.bf16.msra.mxu0 %v1238
  %1295 = vmatpush.bf16.msra.mxu0 %v1234
  %1296 = vmatpush.bf16.msra.mxu0 %v1230
  %1297 = vmatpush.bf16.msra.mxu0 %v1226
  %1298 = vmatmul.bf16.gmra.mxu0 %v49
  %v1299 = vpop.f32.mrf.mxu0
  %v1300 = vadd.f32 0.0, %v1299
  %v1301 = vpop.f32.mrf.mxu0
  %1302 = vdwg.mxu0
  %1303 = vmatpush.bf16.msra.mxu0 %v1255
  %1304 = vmatpush.bf16.msra.mxu0 %v1251
  %1305 = vmatpush.bf16.msra.mxu0 %v1247
  %1306 = vmatpush.bf16.msra.mxu0 %v1243
  %1307 = vmatpush.bf16.msra.mxu0 %v1239
  %1308 = vmatpush.bf16.msra.mxu0 %v1235
  %1309 = vmatpush.bf16.msra.mxu0 %v1231
  %1310 = vmatpush.bf16.msra.mxu0 %v1227
  %1311 = vmatmul.bf16.gmra.mxu0 %v49
  %v1312 = vpop.f32.mrf.mxu0
  %v1313 = vadd.f32 0.0, %v1312
  %v1314 = vpop.f32.mrf.mxu0
  %1315 = vdwg.mxu0
  %1316 = vmatpush.bf16.msra.mxu0 %v1256
  %1317 = vmatpush.bf16.msra.mxu0 %v1252
  %1318 = vmatpush.bf16.msra.mxu0 %v1248
  %1319 = vmatpush.bf16.msra.mxu0 %v1244
  %1320 = vmatpush.bf16.msra.mxu0 %v1240
  %1321 = vmatpush.bf16.msra.mxu0 %v1236
  %1322 = vmatpush.bf16.msra.mxu0 %v1232
  %1323 = vmatpush.bf16.msra.mxu0 %v1228
  %1324 = vmatmul.bf16.gmra.mxu0 %v49
  %v1325 = vpop.f32.mrf.mxu0
  %v1326 = vadd.f32 0.0, %v1325
  %v1327 = vpop.f32.mrf.mxu0
  %1328 = vdwg.mxu0
  %1329 = vmatpush.bf16.msra.mxu0 %v1257
  %1330 = vmatpush.bf16.msra.mxu0 %v1253
  %1331 = vmatpush.bf16.msra.mxu0 %v1249
  %1332 = vmatpush.bf16.msra.mxu0 %v1245
  %1333 = vmatpush.bf16.msra.mxu0 %v1241
  %1334 = vmatpush.bf16.msra.mxu0 %v1237
  %1335 = vmatpush.bf16.msra.mxu0 %v1233
  %1336 = vmatpush.bf16.msra.mxu0 %v1229
  %1337 = vmatmul.bf16.gmra.mxu0 %v49
  %v1338 = vpop.f32.mrf.mxu0
  %v1339 = vadd.f32 0.0, %v1338
  %v1340 = vpop.f32.mrf.mxu0
  %1341 = vdwg.mxu0
  %v1374 = vunpack.c.l.b16 %v1066
  %v1375 = vunpack.c.h.b16 %v1066
  %v1376 = vunpack.c.l.b16 %v1067
  %v1377 = vunpack.c.h.b16 %v1067
  %v1378 = vunpack.c.l.b16 %v1068
  %v1379 = vunpack.c.h.b16 %v1068
  %v1380 = vunpack.c.l.b16 %v1069
  %v1381 = vunpack.c.h.b16 %v1069
  %v1382 = vunpack.c.l.b16 %v1070
  %v1383 = vunpack.c.h.b16 %v1070
  %v1384 = vunpack.c.l.b16 %v1071
  %v1385 = vunpack.c.h.b16 %v1071
  %v1386 = vunpack.c.l.b16 %v1072
  %v1387 = vunpack.c.h.b16 %v1072
  %v1388 = vunpack.c.l.b16 %v1073
  %v1389 = vunpack.c.h.b16 %v1073
  %v1390 = vunpack.c.l.b16 %v1074
  %v1391 = vunpack.c.h.b16 %v1074
  %v1392 = vunpack.c.l.b16 %v1075
  %v1393 = vunpack.c.h.b16 %v1075
  %v1394 = vunpack.c.l.b16 %v1076
  %v1395 = vunpack.c.h.b16 %v1076
  %v1396 = vunpack.c.l.b16 %v1077
  %v1397 = vunpack.c.h.b16 %v1077
  %v1398 = vunpack.c.l.b16 %v1078
  %v1399 = vunpack.c.h.b16 %v1078
  %v1400 = vunpack.c.l.b16 %v1079
  %v1401 = vunpack.c.h.b16 %v1079
  %v1402 = vunpack.c.l.b16 %v1080
  %v1403 = vunpack.c.h.b16 %v1080
  %v1404 = vunpack.c.l.b16 %v1081
  %v1405 = vunpack.c.h.b16 %v1081
  %v1406 = vunpack.c.l.b16 %v1082
  %v1407 = vunpack.c.h.b16 %v1082
  %v1408 = vunpack.c.l.b16 %v1083
  %v1409 = vunpack.c.h.b16 %v1083
  %v1410 = vunpack.c.l.b16 %v1084
  %v1411 = vunpack.c.h.b16 %v1084
  %v1412 = vunpack.c.l.b16 %v1085
  %v1413 = vunpack.c.h.b16 %v1085
  %v1414 = vunpack.c.l.b16 %v1086
  %v1415 = vunpack.c.h.b16 %v1086
  %v1416 = vunpack.c.l.b16 %v1087
  %v1417 = vunpack.c.h.b16 %v1087
  %v1418 = vunpack.c.l.b16 %v1088
  %v1419 = vunpack.c.h.b16 %v1088
  %v1420 = vunpack.c.l.b16 %v1089
  %v1421 = vunpack.c.h.b16 %v1089
  %v1422 = vunpack.c.l.b16 %v1090
  %v1423 = vunpack.c.h.b16 %v1090
  %v1424 = vunpack.c.l.b16 %v1091
  %v1425 = vunpack.c.h.b16 %v1091
  %v1426 = vunpack.c.l.b16 %v1092
  %v1427 = vunpack.c.h.b16 %v1092
  %v1428 = vunpack.c.l.b16 %v1093
  %v1429 = vunpack.c.h.b16 %v1093
  %v1430 = vunpack.c.l.b16 %v1094
  %v1431 = vunpack.c.h.b16 %v1094
  %v1432 = vunpack.c.l.b16 %v1095
  %v1433 = vunpack.c.h.b16 %v1095
  %v1434 = vunpack.c.l.b16 %v1096
  %v1435 = vunpack.c.h.b16 %v1096
  %v1436 = vunpack.c.l.b16 %v1097
  %v1437 = vunpack.c.h.b16 %v1097
  %v1438 = vpack.c.b16 %v1378, %v1374
  %v1439 = vpack.c.b16 %v1379, %v1375
  %v1440 = vpack.c.b16 %v1380, %v1376
  %v1441 = vpack.c.b16 %v1381, %v1377
  %v1442 = vpack.c.b16 %v1386, %v1382
  %v1443 = vpack.c.b16 %v1387, %v1383
  %v1444 = vpack.c.b16 %v1388, %v1384
  %v1445 = vpack.c.b16 %v1389, %v1385
  %v1446 = vpack.c.b16 %v1394, %v1390
  %v1447 = vpack.c.b16 %v1395, %v1391
  %v1448 = vpack.c.b16 %v1396, %v1392
  %v1449 = vpack.c.b16 %v1397, %v1393
  %v1450 = vpack.c.b16 %v1402, %v1398
  %v1451 = vpack.c.b16 %v1403, %v1399
  %v1452 = vpack.c.b16 %v1404, %v1400
  %v1453 = vpack.c.b16 %v1405, %v1401
  %v1454 = vpack.c.b16 %v1410, %v1406
  %v1455 = vpack.c.b16 %v1411, %v1407
  %v1456 = vpack.c.b16 %v1412, %v1408
  %v1457 = vpack.c.b16 %v1413, %v1409
  %v1458 = vpack.c.b16 %v1418, %v1414
  %v1459 = vpack.c.b16 %v1419, %v1415
  %v1460 = vpack.c.b16 %v1420, %v1416
  %v1461 = vpack.c.b16 %v1421, %v1417
  %v1462 = vpack.c.b16 %v1426, %v1422
  %v1463 = vpack.c.b16 %v1427, %v1423
  %v1464 = vpack.c.b16 %v1428, %v1424
  %v1465 = vpack.c.b16 %v1429, %v1425
  %v1466 = vpack.c.b16 %v1434, %v1430
  %v1467 = vpack.c.b16 %v1435, %v1431
  %v1468 = vpack.c.b16 %v1436, %v1432
  %v1469 = vpack.c.b16 %v1437, %v1433
  %1502 = vmatpush.bf16.msra.mxu0 %v1466
  %1503 = vmatpush.bf16.msra.mxu0 %v1462
  %1504 = vmatpush.bf16.msra.mxu0 %v1458
  %1505 = vmatpush.bf16.msra.mxu0 %v1454
  %1506 = vmatpush.bf16.msra.mxu0 %v1450
  %1507 = vmatpush.bf16.msra.mxu0 %v1446
  %1508 = vmatpush.bf16.msra.mxu0 %v1442
  %1509 = vmatpush.bf16.msra.mxu0 %v1438
  %1510 = vmatmul.bf16.gmra.mxu0 %v1065
  %v1511 = vpop.f32.mrf.mxu0
  %v1512 = vadd.f32 %v1300, %v1511
  %v1513 = vpop.f32.mrf.mxu0
  %1514 = vdwg.mxu0
  %1515 = vmatpush.bf16.msra.mxu0 %v1467
  %1516 = vmatpush.bf16.msra.mxu0 %v1463
  %1517 = vmatpush.bf16.msra.mxu0 %v1459
  %1518 = vmatpush.bf16.msra.mxu0 %v1455
  %1519 = vmatpush.bf16.msra.mxu0 %v1451
  %1520 = vmatpush.bf16.msra.mxu0 %v1447
  %1521 = vmatpush.bf16.msra.mxu0 %v1443
  %1522 = vmatpush.bf16.msra.mxu0 %v1439
  %1523 = vmatmul.bf16.gmra.mxu0 %v1065
  %v1524 = vpop.f32.mrf.mxu0
  %v1525 = vadd.f32 %v1313, %v1524
  %v1526 = vpop.f32.mrf.mxu0
  %1527 = vdwg.mxu0
  %1528 = vmatpush.bf16.msra.mxu0 %v1468
  %1529 = vmatpush.bf16.msra.mxu0 %v1464
  %1530 = vmatpush.bf16.msra.mxu0 %v1460
  %1531 = vmatpush.bf16.msra.mxu0 %v1456
  %1532 = vmatpush.bf16.msra.mxu0 %v1452
  %1533 = vmatpush.bf16.msra.mxu0 %v1448
  %1534 = vmatpush.bf16.msra.mxu0 %v1444
  %1535 = vmatpush.bf16.msra.mxu0 %v1440
  %1536 = vmatmul.bf16.gmra.mxu0 %v1065
  %v1537 = vpop.f32.mrf.mxu0
  %v1538 = vadd.f32 %v1326, %v1537
  %v1539 = vpop.f32.mrf.mxu0
  %1540 = vdwg.mxu0
  %1541 = vmatpush.bf16.msra.mxu0 %v1469
  %1542 = vmatpush.bf16.msra.mxu0 %v1465
  %1543 = vmatpush.bf16.msra.mxu0 %v1461
  %1544 = vmatpush.bf16.msra.mxu0 %v1457
  %1545 = vmatpush.bf16.msra.mxu0 %v1453
  %1546 = vmatpush.bf16.msra.mxu0 %v1449
  %1547 = vmatpush.bf16.msra.mxu0 %v1445
  %1548 = vmatpush.bf16.msra.mxu0 %v1441
  %1549 = vmatmul.bf16.gmra.mxu0 %v1065
  %v1550 = vpop.f32.mrf.mxu0
  %v1551 = vadd.f32 %v1339, %v1550
  %v1552 = vpop.f32.mrf.mxu0
  %1553 = vdwg.mxu0
  %v1554 = vld [vmem:[%s10] sm:$0xf]
  %v1556 = vperm.slane %v1554, 0
  %v1557 = vperm.slane %v1554, 1
  %v1558 = vperm.slane %v1554, 2
  %v1559 = vperm.slane %v1554, 3
  %v1564 = vadd.f32 %v1512, %v1556
  %v1565 = vadd.f32 %v1525, %v1557
  %v1566 = vadd.f32 %v1538, %v1558
  %v1567 = vadd.f32 %v1551, %v1559
  %v1568 = vmax.f32 %v1564, 0.0
  %v1569 = vmax.f32 %v1565, 0.0
  %v1570 = vmax.f32 %v1566, 0.0
  %v1571 = vmax.f32 %v1567, 0.0
  %v1572 = vpack.c.bf16 %v1568, %v1568
  %v1573 = vpack.c.bf16 %v1569, %v1569
  %v1574 = vpack.c.bf16 %v1570, %v1570
  %v1575 = vpack.c.bf16 %v1571, %v1571
  %v1576 = vld [vmem:[%s11] sm:$0xf]
  %v1577 = vld [vmem:[%s11 + $0x4] sm:$0xf]
  %v1578 = vld [vmem:[%s11 + $0x8] sm:$0xf]
  %v1579 = vld [vmem:[%s11 + $0xc] sm:$0xf]
  %v1580 = vld [vmem:[%s11 + $0x10] sm:$0xf]
  %v1581 = vld [vmem:[%s11 + $0x14] sm:$0xf]
  %v1582 = vld [vmem:[%s11 + $0x18] sm:$0xf]
  %v1583 = vld [vmem:[%s11 + $0x1c] sm:$0xf]
  %v1584 = vld [vmem:[%s11 + $0x20] sm:$0xf]
  %v1585 = vld [vmem:[%s11 + $0x24] sm:$0xf]
  %v1586 = vld [vmem:[%s11 + $0x28] sm:$0xf]
  %v1587 = vld [vmem:[%s11 + $0x2c] sm:$0xf]
  %v1588 = vld [vmem:[%s11 + $0x30] sm:$0xf]
  %v1589 = vld [vmem:[%s11 + $0x34] sm:$0xf]
  %v1590 = vld [vmem:[%s11 + $0x38] sm:$0xf]
  %v1591 = vld [vmem:[%s11 + $0x3c] sm:$0xf]
  %v1592 = vld [vmem:[%s11 + $0x40] sm:$0xf]
  %v1593 = vld [vmem:[%s11 + $0x44] sm:$0xf]
  %v1594 = vld [vmem:[%s11 + $0x48] sm:$0xf]
  %v1595 = vld [vmem:[%s11 + $0x4c] sm:$0xf]
  %v1596 = vld [vmem:[%s11 + $0x50] sm:$0xf]
  %v1597 = vld [vmem:[%s11 + $0x54] sm:$0xf]
  %v1598 = vld [vmem:[%s11 + $0x58] sm:$0xf]
  %v1599 = vld [vmem:[%s11 + $0x5c] sm:$0xf]
  %v1600 = vld [vmem:[%s11 + $0x60] sm:$0xf]
  %v1601 = vld [vmem:[%s11 + $0x64] sm:$0xf]
  %v1602 = vld [vmem:[%s11 + $0x68] sm:$0xf]
  %v1603 = vld [vmem:[%s11 + $0x6c] sm:$0xf]
  %v1604 = vld [vmem:[%s11 + $0x70] sm:$0xf]
  %v1605 = vld [vmem:[%s11 + $0x74] sm:$0xf]
  %v1606 = vld [vmem:[%s11 + $0x78] sm:$0xf]
  %v1607 = vld [vmem:[%s11 + $0x7c] sm:$0xf]
  %v1608 = vld [vmem:[%s11 + $0x80] sm:$0xf]
  %v1609 = vld [vmem:[%s11 + $0x84] sm:$0xf]
  %v1610 = vld [vmem:[%s11 + $0x88] sm:$0xf]
  %v1611 = vld [vmem:[%s11 + $0x8c] sm:$0xf]
  %v1612 = vld [vmem:[%s11 + $0x90] sm:$0xf]
  %v1613 = vld [vmem:[%s11 + $0x94] sm:$0xf]
  %v1614 = vld [vmem:[%s11 + $0x98] sm:$0xf]
  %v1615 = vld [vmem:[%s11 + $0x9c] sm:$0xf]
  %v1616 = vld [vmem:[%s11 + $0xa0] sm:$0xf]
  %v1617 = vld [vmem:[%s11 + $0xa4] sm:$0xf]
  %v1618 = vld [vmem:[%s11 + $0xa8] sm:$0xf]
  %v1619 = vld [vmem:[%s11 + $0xac] sm:$0xf]
  %v1620 = vld [vmem:[%s11 + $0xb0] sm:$0xf]
  %v1621 = vld [vmem:[%s11 + $0xb4] sm:$0xf]
  %v1622 = vld [vmem:[%s11 + $0xb8] sm:$0xf]
  %v1623 = vld [vmem:[%s11 + $0xbc] sm:$0xf]
  %v1624 = vld [vmem:[%s11 + $0xc0] sm:$0xf]
  %v1625 = vld [vmem:[%s11 + $0xc4] sm:$0xf]
  %v1626 = vld [vmem:[%s11 + $0xc8] sm:$0xf]
  %v1627 = vld [vmem:[%s11 + $0xcc] sm:$0xf]
  %v1628 = vld [vmem:[%s11 + $0xd0] sm:$0xf]
  %v1629 = vld [vmem:[%s11 + $0xd4] sm:$0xf]
  %v1630 = vld [vmem:[%s11 + $0xd8] sm:$0xf]
  %v1631 = vld [vmem:[%s11 + $0xdc] sm:$0xf]
  %v1632 = vld [vmem:[%s11 + $0xe0] sm:$0xf]
  %v1633 = vld [vmem:[%s11 + $0xe4] sm:$0xf]
  %v1634 = vld [vmem:[%s11 + $0xe8] sm:$0xf]
  %v1635 = vld [vmem:[%s11 + $0xec] sm:$0xf]
  %v1636 = vld [vmem:[%s11 + $0xf0] sm:$0xf]
  %v1637 = vld [vmem:[%s11 + $0xf4] sm:$0xf]
  %v1638 = vld [vmem:[%s11 + $0xf8] sm:$0xf]
  %v1639 = vld [vmem:[%s11 + $0xfc] sm:$0xf]
  %v1640 = vld [vmem:[%s12] sm:$0x1]
  %v1642 = vperm.slane %v1640, 0
  %v1708 = vunpack.c.l.b16 %v1576
  %v1709 = vunpack.c.l.b16 %v1577
  %v1710 = vunpack.c.l.b16 %v1578
  %v1711 = vunpack.c.l.b16 %v1579
  %v1712 = vunpack.c.l.b16 %v1580
  %v1713 = vunpack.c.l.b16 %v1581
  %v1714 = vunpack.c.l.b16 %v1582
  %v1715 = vunpack.c.l.b16 %v1583
  %v1716 = vunpack.c.l.b16 %v1584
  %v1717 = vunpack.c.l.b16 %v1585
  %v1718 = vunpack.c.l.b16 %v1586
  %v1719 = vunpack.c.l.b16 %v1587
  %v1720 = vunpack.c.l.b16 %v1588
  %v1721 = vunpack.c.l.b16 %v1589
  %v1722 = vunpack.c.l.b16 %v1590
  %v1723 = vunpack.c.l.b16 %v1591
  %v1724 = vunpack.c.l.b16 %v1592
  %v1725 = vunpack.c.l.b16 %v1593
  %v1726 = vunpack.c.l.b16 %v1594
  %v1727 = vunpack.c.l.b16 %v1595
  %v1728 = vunpack.c.l.b16 %v1596
  %v1729 = vunpack.c.l.b16 %v1597
  %v1730 = vunpack.c.l.b16 %v1598
  %v1731 = vunpack.c.l.b16 %v1599
  %v1732 = vunpack.c.l.b16 %v1600
  %v1733 = vunpack.c.l.b16 %v1601
  %v1734 = vunpack.c.l.b16 %v1602
  %v1735 = vunpack.c.l.b16 %v1603
  %v1736 = vunpack.c.l.b16 %v1604
  %v1737 = vunpack.c.l.b16 %v1605
  %v1738 = vunpack.c.l.b16 %v1606
  %v1739 = vunpack.c.l.b16 %v1607
  %v1740 = vunpack.c.l.b16 %v1608
  %v1741 = vunpack.c.l.b16 %v1609
  %v1742 = vunpack.c.l.b16 %v1610
  %v1743 = vunpack.c.l.b16 %v1611
  %v1744 = vunpack.c.l.b16 %v1612
  %v1745 = vunpack.c.l.b16 %v1613
  %v1746 = vunpack.c.l.b16 %v1614
  %v1747 = vunpack.c.l.b16 %v1615
  %v1748 = vunpack.c.l.b16 %v1616
  %v1749 = vunpack.c.l.b16 %v1617
  %v1750 = vunpack.c.l.b16 %v1618
  %v1751 = vunpack.c.l.b16 %v1619
  %v1752 = vunpack.c.l.b16 %v1620
  %v1753 = vunpack.c.l.b16 %v1621
  %v1754 = vunpack.c.l.b16 %v1622
  %v1755 = vunpack.c.l.b16 %v1623
  %v1756 = vunpack.c.l.b16 %v1624
  %v1757 = vunpack.c.l.b16 %v1625
  %v1758 = vunpack.c.l.b16 %v1626
  %v1759 = vunpack.c.l.b16 %v1627
  %v1760 = vunpack.c.l.b16 %v1628
  %v1761 = vunpack.c.l.b16 %v1629
  %v1762 = vunpack.c.l.b16 %v1630
  %v1763 = vunpack.c.l.b16 %v1631
  %v1764 = vunpack.c.l.b16 %v1632
  %v1765 = vunpack.c.l.b16 %v1633
  %v1766 = vunpack.c.l.b16 %v1634
  %v1767 = vunpack.c.l.b16 %v1635
  %v1768 = vunpack.c.l.b16 %v1636
  %v1769 = vunpack.c.l.b16 %v1637
  %v1770 = vunpack.c.l.b16 %v1638
  %v1771 = vunpack.c.l.b16 %v1639
  %v1772 = vpack.c.b16 %v1709, %v1708
  %v1773 = vpack.c.b16 %v1711, %v1710
  %v1774 = vpack.c.b16 %v1713, %v1712
  %v1775 = vpack.c.b16 %v1715, %v1714
  %v1776 = vpack.c.b16 %v1717, %v1716
  %v1777 = vpack.c.b16 %v1719, %v1718
  %v1778 = vpack.c.b16 %v1721, %v1720
  %v1779 = vpack.c.b16 %v1723, %v1722
  %v1780 = vpack.c.b16 %v1725, %v1724
  %v1781 = vpack.c.b16 %v1727, %v1726
  %v1782 = vpack.c.b16 %v1729, %v1728
  %v1783 = vpack.c.b16 %v1731, %v1730
  %v1784 = vpack.c.b16 %v1733, %v1732
  %v1785 = vpack.c.b16 %v1735, %v1734
  %v1786 = vpack.c.b16 %v1737, %v1736
  %v1787 = vpack.c.b16 %v1739, %v1738
  %v1788 = vpack.c.b16 %v1741, %v1740
  %v1789 = vpack.c.b16 %v1743, %v1742
  %v1790 = vpack.c.b16 %v1745, %v1744
  %v1791 = vpack.c.b16 %v1747, %v1746
  %v1792 = vpack.c.b16 %v1749, %v1748
  %v1793 = vpack.c.b16 %v1751, %v1750
  %v1794 = vpack.c.b16 %v1753, %v1752
  %v1795 = vpack.c.b16 %v1755, %v1754
  %v1796 = vpack.c.b16 %v1757, %v1756
  %v1797 = vpack.c.b16 %v1759, %v1758
  %v1798 = vpack.c.b16 %v1761, %v1760
  %v1799 = vpack.c.b16 %v1763, %v1762
  %v1800 = vpack.c.b16 %v1765, %v1764
  %v1801 = vpack.c.b16 %v1767, %v1766
  %v1802 = vpack.c.b16 %v1769, %v1768
  %v1803 = vpack.c.b16 %v1771, %v1770
  %1836 = vmatpush.bf16.msra.mxu0 %v1779
  %1837 = vmatpush.bf16.msra.mxu0 %v1778
  %1838 = vmatpush.bf16.msra.mxu0 %v1777
  %1839 = vmatpush.bf16.msra.mxu0 %v1776
  %1840 = vmatpush.bf16.msra.mxu0 %v1775
  %1841 = vmatpush.bf16.msra.mxu0 %v1774
  %1842 = vmatpush.bf16.msra.mxu0 %v1773
  %1843 = vmatpush.bf16.msra.mxu0 %v1772
  %1844 = vmatmul.bf16.gmra.mxu0 %v1572
  %v1845 = vpop.f32.mrf.mxu0
  %v1846 = vadd.f32 %v1642, %v1845
  %v1847 = vpop.f32.mrf.mxu0
  %1848 = vdwg.mxu0
  %1849 = vmatpush.bf16.msra.mxu0 %v1787
  %1850 = vmatpush.bf16.msra.mxu0 %v1786
  %1851 = vmatpush.bf16.msra.mxu0 %v1785
  %1852 = vmatpush.bf16.msra.mxu0 %v1784
  %1853 = vmatpush.bf16.msra.mxu0 %v1783
  %1854 = vmatpush.bf16.msra.mxu0 %v1782
  %1855 = vmatpush.bf16.msra.mxu0 %v1781
  %1856 = vmatpush.bf16.msra.mxu0 %v1780
  %1857 = vmatmul.bf16.gmra.mxu0 %v1573
  %v1858 = vpop.f32.mrf.mxu0
  %v1859 = vadd.f32 %v1846, %v1858
  %v1860 = vpop.f32.mrf.mxu0
  %1861 = vdwg.mxu0
  %1862 = vmatpush.bf16.msra.mxu0 %v1795
  %1863 = vmatpush.bf16.msra.mxu0 %v1794
  %1864 = vmatpush.bf16.msra.mxu0 %v1793
  %1865 = vmatpush.bf16.msra.mxu0 %v1792
  %1866 = vmatpush.bf16.msra.mxu0 %v1791
  %1867 = vmatpush.bf16.msra.mxu0 %v1790
  %1868 = vmatpush.bf16.msra.mxu0 %v1789
  %1869 = vmatpush.bf16.msra.mxu0 %v1788
  %1870 = vmatmul.bf16.gmra.mxu0 %v1574
  %v1871 = vpop.f32.mrf.mxu0
  %v1872 = vadd.f32 %v1859, %v1871
  %v1873 = vpop.f32.mrf.mxu0
  %1874 = vdwg.mxu0
  %1875 = vmatpush.bf16.msra.mxu0 %v1803
  %1876 = vmatpush.bf16.msra.mxu0 %v1802
  %1877 = vmatpush.bf16.msra.mxu0 %v1801
  %1878 = vmatpush.bf16.msra.mxu0 %v1800
  %1879 = vmatpush.bf16.msra.mxu0 %v1799
  %1880 = vmatpush.bf16.msra.mxu0 %v1798
  %1881 = vmatpush.bf16.msra.mxu0 %v1797
  %1882 = vmatpush.bf16.msra.mxu0 %v1796
  %1883 = vmatmul.bf16.gmra.mxu0 %v1575
  %v1884 = vpop.f32.mrf.mxu0
  %v1885 = vadd.f32 %v1872, %v1884
  %v1886 = vpop.f32.mrf.mxu0
  %1887 = vdwg.mxu0
  %v1888 = vxor.u32 %v1885, 2147483648
  %v1889 = vmul.f32 %v1888, 1.442695
  %v1890 = vpow.pop %v1889
  %v1891 = vadd.f32 %v1890, 1.0
  %v1892 = vrcp.pop %v1891
  %v1893 = vmul.f32 %v1891, %v1892
  %v1894 = vsub.f32 1.0, %v1893
  %v1895 = vmul.f32 %v1892, %v1894
  %v1896 = vadd.f32 %v1892, %v1895
  %vm1897 = vweird.f32 %v1891
  %vm1898 = vweird.f32 %v1892
  %vm1899 = vmor %vm1897, %vm1898
  %v1900 = vsel %vm1899, %v1892, %v1896
  %v1901 = vand.u32 2147483647, %v1891
  %vm1902 = vcmp.eq.f32.partialorder %v1901, 8.507059e+37
  %v1903 = vand.u32 %v1891, 2147483648
  %v1904 = vor.u32 1.1754944e-38, %v1903
  %v1905 = vsel %vm1902, %v1904, %v1900
  %v1906 = vmul.f32 1.0, %v1905
  %1907 = vst [vmem:[%s13] sm:$0xff] %v1906
  // Predicated region
  $region54: #{conditional_vae_forward.1} parent=0 // pred_check
    _
  $region55: #{conditional_vae_forward.1} parent=0 // pred_check_branch
    %1909 = sbr.rel (0) target = $region57
  $region56: #{conditional_vae_forward.1} parent=0 // pred_region
    _
  $region57: #{conditional_vae_forward.1} parent=0 // pred_fallthru
    _
  // Predicated region
  $region58: #{conditional_vae_forward.1} parent=0 // pred_check
    _
  $region59: #{conditional_vae_forward.1} parent=0 // pred_check_branch
    %1911 = sbr.rel (0) target = $region61
  $region60: #{conditional_vae_forward.1} parent=0 // pred_region
    _
  $region61: #{conditional_vae_forward.1} parent=0 // pred_fallthru
    _
  // Predicated region
  $region62: #{conditional_vae_forward.1} parent=0 // pred_check
    _
  $region63: #{conditional_vae_forward.1} parent=0 // pred_check_branch
    %1913 = sbr.rel (0) target = $region65
  $region64: #{conditional_vae_forward.1} parent=0 // pred_region
    _
  $region65: #{conditional_vae_forward.1} parent=0 // pred_fallthru
    _
  // Predicated region
  $region66: #{conditional_vae_forward.1} parent=0 // pred_check
    _
  $region67: #{conditional_vae_forward.1} parent=0 // pred_check_branch
    %1915 = sbr.rel (0) target = $region69
  $region68: #{conditional_vae_forward.1} parent=0 // pred_region
    _
  $region69: #{conditional_vae_forward.1} parent=0 // pred_fallthru
    _

</llo_original>
